<compile_context>
chip_gen: v7x
topology: tpu7x:2x2x1
jax: 0.10.0
libtpu: 0.0.40
codegen_flags: <defaults>
</compile_context>

<pallas_src>
import functools

import numpy as np
import jax
import jax.numpy as jnp
from jax import lax
from jax.experimental import pallas as pl
from jax.experimental.pallas import tpu as pltpu

EPS = 1e-5


def _round_up(x, m):
    return (x + m - 1) // m * m


# ---------------------------------------------------------------------------
# Fused PreResUnit kernel.
# Layout per image: (C, Lp) where Lp = (H+3)*(W+2) is the zero-padded image
# flattened with its width padding, so tap (kh, kw) of a 3x3 conv is the
# contiguous lane slice [kh*(W+2)+kw : kh*(W+2)+kw + H*(W+2)].
# The output slab has length Lc = H*(W+2); the 2 junk columns per row are
# dropped in the wrapper.
# ---------------------------------------------------------------------------
def _make_preres_unit_kernel(H, W, resize_identity):
    Wp = W + 2                       # padded width
    Lp = (H + 3) * Wp                # flattened padded-spatial length
    Lc = H * Wp                      # output-slab length (valid rows, padded W)
    OFF = W + 3                      # flat offset of pixel (0,0) inside the pad
    TAIL = Lp - OFF - Lc
    TAPS = tuple(kh * Wp + kw for kh in range(3) for kw in range(3))

    def kernel(xp_ref, mask1_ref, mask2_ref, s1_ref, t1_ref, s2_ref, t2_ref,
               w1_ref, w2_ref, out_ref, p1_ref, p2_ref, cols1_ref, cols2_ref):
        cin = xp_ref.shape[1]
        cmid = p2_ref.shape[0]

        x = xp_ref[0]                                           # (Cin, Lp)

        # BN1 + ReLU on the padded input; mask1 re-zeroes the halo so the zero
        # padding is applied *after* the affine+ReLU (Conv2d(padding=1)).
        pre1 = jnp.maximum(x * s1_ref[...] + t1_ref[...], 0.0) * mask1_ref[...]
        p1_ref[...] = pre1

        # conv1: single lane-dense im2col matmul. Every 3x3 tap is a
        # contiguous lane slice of the padded pre-activation.
        for t, o in enumerate(TAPS):
            cols1_ref[pl.ds(t * cin, cin), :] = p1_ref[:, pl.ds(o, Lc)]
        y1 = jnp.dot(w1_ref[...], cols1_ref[...],
                     preferred_element_type=jnp.float32)        # (Cmid, Lc)

        # BN2 + ReLU; mask2 zeroes the 2 junk columns per row, then the slab is
        # placed into the padded scratch at offset OFF (== shift by one pad row
        # plus one pad column).  Only the small static border is re-zeroed;
        # the interior is fully overwritten every grid step.
        pre2 = jnp.maximum(y1 * s2_ref[...] + t2_ref[...], 0.0) * mask2_ref[...]
        p2_ref[:, pl.ds(0, OFF)] = jnp.zeros((cmid, OFF), jnp.float32)
        p2_ref[:, pl.ds(OFF + Lc, TAIL)] = jnp.zeros((cmid, TAIL), jnp.float32)
        p2_ref[:, pl.ds(OFF, Lc)] = pre2

        # conv2 (+ fused residual 1x1 conv) as one im2col matmul.
        for t, o in enumerate(TAPS):
            cols2_ref[pl.ds(t * cmid, cmid), :] = p2_ref[:, pl.ds(o, Lc)]
        if resize_identity:
            # identity = 1x1 conv of the conv1 pre-activation: appended as
            # extra K rows (matching weight columns were pre-concatenated).
            cols2_ref[pl.ds(9 * cmid, cin), :] = p1_ref[:, pl.ds(OFF, Lc)]
        out = jnp.dot(w2_ref[...], cols2_ref[...],
                      preferred_element_type=jnp.float32)       # (Cout, Lc)
        if not resize_identity:
            out = out + xp_ref[0, :, pl.ds(OFF, Lc)]            # identity = x
        out_ref[0] = out.astype(out_ref.dtype)

    return kernel


def _preres_unit_pallas(xp, mask1, mask2, s1, t1, s2, t2, w1m, w2m,
                        *, H, W, resize_identity):
    N, cin, Lp = xp.shape
    cmid = w1m.shape[0]
    cout = w2m.shape[0]
    Lc = H * (W + 2)
    k2 = 9 * cmid + (cin if resize_identity else 0)
    assert w2m.shape[1] == k2

    kernel = _make_preres_unit_kernel(H, W, resize_identity)
    return pl.pallas_call(
        kernel,
        out_shape=jax.ShapeDtypeStruct((N, cout, Lc), jnp.float32),
        grid=(N,),
        in_specs=[
            pl.BlockSpec((1, cin, Lp), lambda n: (n, 0, 0)),     # padded input
            pl.BlockSpec((1, Lp), lambda n: (0, 0)),             # mask1
            pl.BlockSpec((1, Lc), lambda n: (0, 0)),             # mask2
            pl.BlockSpec((cin, 1), lambda n: (0, 0)),            # bn1 scale
            pl.BlockSpec((cin, 1), lambda n: (0, 0)),            # bn1 shift
            pl.BlockSpec((cmid, 1), lambda n: (0, 0)),           # bn2 scale
            pl.BlockSpec((cmid, 1), lambda n: (0, 0)),           # bn2 shift
            pl.BlockSpec((cmid, 9 * cin), lambda n: (0, 0)),     # conv1 weights
            pl.BlockSpec((cout, k2), lambda n: (0, 0)),          # conv2 (+id) w
        ],
        out_specs=pl.BlockSpec((1, cout, Lc), lambda n: (n, 0, 0)),
        scratch_shapes=[
            pltpu.VMEM((cin, Lp), jnp.float32),      # padded pre-activation 1
            pltpu.VMEM((cmid, Lp), jnp.float32),     # padded pre-activation 2
            pltpu.VMEM((9 * cin, Lc), jnp.float32),  # im2col for conv1
            pltpu.VMEM((k2, Lc), jnp.float32),       # im2col for conv2 (+ id)
        ],
        compiler_params=pltpu.CompilerParams(
            dimension_semantics=("parallel",)),
    )(xp, mask1, mask2, s1, t1, s2, t2, w1m, w2m)


# ---------------------------------------------------------------------------
# Wrapper: NCHW in -> NCHW out (no transposes needed).
# ---------------------------------------------------------------------------
@functools.partial(jax.jit, static_argnames=("resize_identity",))
def preres_unit_forward(x_nchw, params, resize_identity=True):
    x = x_nchw.astype(jnp.float32)
    N, cin, H, W = x.shape
    cmid = params["w1"].shape[-1]
    cout = params["w2"].shape[-1]
    if not resize_identity:
        assert cin == cout, "identity pass-through needs in_ch == out_ch"

    # Channels live on the sublane axis in the kernel layout -> pad to 8.
    cin_p, cmid_p, cout_p = (_round_up(c, 8) for c in (cin, cmid, cout))

    Wp, Lp, Lc = W + 2, (H + 3) * (W + 2), H * (W + 2)

    # Pad H by (1,2), W by (1,1), channels to cin_p, then flatten the spatial
    # dims so that every 3x3 tap becomes a contiguous lane slice.
    xp = jnp.pad(x, ((0, 0), (0, cin_p - cin), (1, 2), (1, 1)))
    xp = xp.reshape(N, cin_p, Lp)

    # Static validity masks (constants).
    m1 = np.zeros((H + 3, Wp), np.float32)
    m1[1:H + 1, 1:W + 1] = 1.0
    m2 = np.zeros((H, Wp), np.float32)
    m2[:, :W] = 1.0
    mask1 = jnp.asarray(m1.reshape(1, Lp))
    mask2 = jnp.asarray(m2.reshape(1, Lc))

    # Fold inference BatchNorm into per-channel scale/shift (padded channels
    # get scale=shift=0 -> exact zeros after ReLU).
    def fold(g, b, m, v, cp):
        s = g / jnp.sqrt(v + EPS)
        t = b - m * s
        sp = jnp.zeros((cp,), jnp.float32).at[:g.shape[0]].set(s)
        tp = jnp.zeros((cp,), jnp.float32).at[:g.shape[0]].set(t)
        return sp.reshape(cp, 1), tp.reshape(cp, 1)

    s1, t1 = fold(params["g1"], params["b1"], params["rm1"], params["rv1"], cin_p)
    s2, t2 = fold(params["g2"], params["b2"], params["rm2"], params["rv2"], cmid_p)

    # im2col weight matrices (HWIO -> (Cout, 9*Cin)), channel-padded.
    w1p = jnp.zeros((3, 3, cin_p, cmid_p), jnp.float32)
    w1p = w1p.at[:, :, :cin, :cmid].set(params["w1"].astype(jnp.float32))
    w1m = w1p.reshape(9 * cin_p, cmid_p).T

    w2p = jnp.zeros((3, 3, cmid_p, cout_p), jnp.float32)
    w2p = w2p.at[:, :, :cmid, :cout].set(params["w2"].astype(jnp.float32))
    w2m = w2p.reshape(9 * cmid_p, cout_p).T
    if resize_identity:
        widp = jnp.zeros((cin_p, cout_p), jnp.float32)
        widp = widp.at[:cin, :cout].set(params["wid"].astype(jnp.float32))
        w2m = jnp.concatenate([w2m, widp.T], axis=1)   # fuse identity 1x1 conv

    out_slab = _preres_unit_pallas(
        xp, mask1, mask2, s1, t1, s2, t2, w1m, w2m,
        H=H, W=W, resize_identity=resize_identity)

    # Lane-dense slab (N, Cout_p, H*(W+2)) -> NCHW, dropping channel padding
    # and the 2 junk columns per row.
    return out_slab.reshape(N, cout_p, H, Wp)[:, :cout, :, :W]


# ---------------------------------------------------------------------------
# Parameters + pure-JAX reference.
# ---------------------------------------------------------------------------
def make_params(key, in_channels, out_channels):
    ks = jax.random.split(key, 8)
    p = {}
    p["g1"] = 0.5 + jax.random.uniform(ks[0], (in_channels,))
    p["b1"] = 0.1 * jax.random.normal(ks[1], (in_channels,))
    p["rm1"] = 0.1 * jax.random.normal(ks[2], (in_channels,))
    p["rv1"] = 0.5 + jax.random.uniform(ks[3], (in_channels,))
    p["w1"] = jax.random.normal(ks[4], (3, 3, in_channels, out_channels)) / (
        3.0 * jnp.sqrt(float(in_channels)))
    p["g2"] = 0.5 + jax.random.uniform(ks[5], (out_channels,))
    p["b2"] = 0.1 * jax.random.normal(ks[6], (out_channels,))
    p["rm2"] = jnp.zeros((out_channels,))
    p["rv2"] = jnp.ones((out_channels,))
    p["w2"] = jax.random.normal(ks[7], (3, 3, out_channels, out_channels)) / (
        3.0 * jnp.sqrt(float(out_channels)))
    p["wid"] = jax.random.normal(jax.random.fold_in(key, 99),
                                 (in_channels, out_channels)) / jnp.sqrt(
                                     float(in_channels))
    return p


def reference_forward(x_nchw, params, resize_identity=True):
    x = jnp.transpose(x_nchw, (0, 2, 3, 1)).astype(jnp.float32)
    dn = ("NHWC", "HWIO", "NHWC")

    def bn_relu(v, g, b, m, var):
        return jnp.maximum((v - m) / jnp.sqrt(var + EPS) * g + b, 0.0)

    pre1 = bn_relu(x, params["g1"], params["b1"], params["rm1"], params["rv1"])
    y1 = lax.conv_general_dilated(pre1, params["w1"], (1, 1), "SAME",
                                  dimension_numbers=dn)
    pre2 = bn_relu(y1, params["g2"], params["b2"], params["rm2"], params["rv2"])
    y2 = lax.conv_general_dilated(pre2, params["w2"], (1, 1), "SAME",
                                  dimension_numbers=dn)
    if resize_identity:
        identity = lax.conv_general_dilated(
            pre1, params["wid"].reshape(1, 1, *params["wid"].shape), (1, 1),
            "VALID", dimension_numbers=dn)
    else:
        identity = x
    return jnp.transpose(y2 + identity, (0, 3, 1, 2))


if __name__ == "__main__":
    key = jax.random.PRNGKey(0)
    k_x, k_p = jax.random.split(key)

    N, Cin, H, W = 2, 4, 16, 16
    Cout = 8                       # in_ch != out_ch -> resize_identity == True
    x = jax.random.normal(k_x, (N, Cin, H, W), dtype=jnp.float32)
    params = make_params(k_p, Cin, Cout)

    out = preres_unit_forward(x, params, resize_identity=True)
    out = jax.block_until_ready(out)

    ref = reference_forward(x, params, resize_identity=True)
    assert out.shape == (N, Cout, H, W)
    err = jnp.max(jnp.abs(out - ref))
    assert jnp.allclose(out, ref, atol=1e-3, rtol=1e-3), f"max abs err {err}"

    print("KERNEL_OK")
</pallas_src>

<mosaic_0001>
module attributes {stable_mosaic.version = 11 : i64} {
  func.func @kernel(%arg0: i32, %arg1: memref<1x8x342xf32, #tpu.memory_space<vmem>>, %arg2: memref<1x342xf32, #tpu.memory_space<vmem>>, %arg3: memref<1x288xf32, #tpu.memory_space<vmem>>, %arg4: memref<8x1xf32, #tpu.memory_space<vmem>>, %arg5: memref<8x1xf32, #tpu.memory_space<vmem>>, %arg6: memref<8x1xf32, #tpu.memory_space<vmem>>, %arg7: memref<8x1xf32, #tpu.memory_space<vmem>>, %arg8: memref<8x72xf32, #tpu.memory_space<vmem>>, %arg9: memref<8x80xf32, #tpu.memory_space<vmem>>, %arg10: memref<1x8x288xf32, #tpu.memory_space<vmem>>, %arg11: memref<8x342xf32, #tpu.memory_space<vmem>>, %arg12: memref<8x342xf32, #tpu.memory_space<vmem>>, %arg13: memref<72x288xf32, #tpu.memory_space<vmem>>, %arg14: memref<80x288xf32, #tpu.memory_space<vmem>>) attributes {dimension_semantics = [#tpu.dimension_semantics<parallel>], iteration_bounds = array<i64: 2>, scalar_prefetch = 0 : i64, scratch_operands = 4 : i64, tpu.core_type = #tpu.core_type<tc>, window_params = [{transform_indices = @transform_0, window_bounds = array<i64: 1, 8, 342>}, {pipeline_mode = #tpu.pipeline_mode<synchronous>, transform_indices = @transform_1, window_bounds = array<i64: 1, 342>}, {pipeline_mode = #tpu.pipeline_mode<synchronous>, transform_indices = @transform_2, window_bounds = array<i64: 1, 288>}, {pipeline_mode = #tpu.pipeline_mode<synchronous>, transform_indices = @transform_3, window_bounds = array<i64: 8, 1>}, {pipeline_mode = #tpu.pipeline_mode<synchronous>, transform_indices = @transform_4, window_bounds = array<i64: 8, 1>}, {pipeline_mode = #tpu.pipeline_mode<synchronous>, transform_indices = @transform_5, window_bounds = array<i64: 8, 1>}, {pipeline_mode = #tpu.pipeline_mode<synchronous>, transform_indices = @transform_6, window_bounds = array<i64: 8, 1>}, {pipeline_mode = #tpu.pipeline_mode<synchronous>, transform_indices = @transform_7, window_bounds = array<i64: 8, 72>}, {pipeline_mode = #tpu.pipeline_mode<synchronous>, transform_indices = @transform_8, window_bounds = array<i64: 8, 80>}, {transform_indices = @transform_9, window_bounds = array<i64: 1, 8, 288>}]} {
    %c0 = arith.constant 0 : index
    %c0_0 = arith.constant 0 : index
    %c0_1 = arith.constant 0 : index
    %0 = vector.load %arg1[%c0, %c0_0, %c0_1] : memref<1x8x342xf32, #tpu.memory_space<vmem>>, vector<1x8x342xf32>
    %1 = vector.shape_cast %0 : vector<1x8x342xf32> to vector<8x342xf32>
    %c0_2 = arith.constant 0 : index
    %c0_3 = arith.constant 0 : index
    %2 = vector.load %arg4[%c0_2, %c0_3] : memref<8x1xf32, #tpu.memory_space<vmem>>, vector<8x1xf32>
    %3 = vector.broadcast %2 : vector<8x1xf32> to vector<8x342xf32>
    %4 = arith.mulf %1, %3 : vector<8x342xf32>
    %c0_4 = arith.constant 0 : index
    %c0_5 = arith.constant 0 : index
    %5 = vector.load %arg5[%c0_4, %c0_5] : memref<8x1xf32, #tpu.memory_space<vmem>>, vector<8x1xf32>
    %6 = vector.broadcast %5 : vector<8x1xf32> to vector<8x342xf32>
    %7 = arith.addf %4, %6 : vector<8x342xf32>
    %cst = arith.constant 0.000000e+00 : f32
    %8 = vector.broadcast %cst : f32 to vector<8x342xf32>
    %9 = arith.maximumf %7, %8 : vector<8x342xf32>
    %c0_6 = arith.constant 0 : index
    %c0_7 = arith.constant 0 : index
    %10 = vector.load %arg2[%c0_6, %c0_7] : memref<1x342xf32, #tpu.memory_space<vmem>>, vector<1x342xf32>
    %11 = vector.broadcast %10 : vector<1x342xf32> to vector<8x342xf32>
    %12 = arith.mulf %9, %11 : vector<8x342xf32>
    %c0_8 = arith.constant 0 : index
    %c0_9 = arith.constant 0 : index
    %13 = vector.load %arg11[%c0_8, %c0_9] : memref<8x342xf32, #tpu.memory_space<vmem>>, vector<8x342xf32>
    tpu.vector_store %arg11[%c0_8, %c0_9], %12 {strides = array<i32>} : memref<8x342xf32, #tpu.memory_space<vmem>>, vector<8x342xf32>,
    %c0_10 = arith.constant 0 : index
    %c0_11 = arith.constant 0 : index
    %14 = vector.load %arg11[%c0_10, %c0_11] : memref<8x342xf32, #tpu.memory_space<vmem>>, vector<8x288xf32>
    %c0_12 = arith.constant 0 : index
    %c0_13 = arith.constant 0 : index
    %15 = vector.load %arg13[%c0_12, %c0_13] : memref<72x288xf32, #tpu.memory_space<vmem>>, vector<8x288xf32>
    tpu.vector_store %arg13[%c0_12, %c0_13], %14 {strides = array<i32>} : memref<72x288xf32, #tpu.memory_space<vmem>>, vector<8x288xf32>,
    %c0_14 = arith.constant 0 : index
    %c1 = arith.constant 1 : index
    %16 = vector.load %arg11[%c0_14, %c1] : memref<8x342xf32, #tpu.memory_space<vmem>>, vector<8x288xf32>
    %c8 = arith.constant 8 : index
    %c0_15 = arith.constant 0 : index
    %17 = vector.load %arg13[%c8, %c0_15] : memref<72x288xf32, #tpu.memory_space<vmem>>, vector<8x288xf32>
    tpu.vector_store %arg13[%c8, %c0_15], %16 {strides = array<i32>} : memref<72x288xf32, #tpu.memory_space<vmem>>, vector<8x288xf32>,
    %c0_16 = arith.constant 0 : index
    %c2 = arith.constant 2 : index
    %18 = vector.load %arg11[%c0_16, %c2] : memref<8x342xf32, #tpu.memory_space<vmem>>, vector<8x288xf32>
    %c16 = arith.constant 16 : index
    %c0_17 = arith.constant 0 : index
    %19 = vector.load %arg13[%c16, %c0_17] : memref<72x288xf32, #tpu.memory_space<vmem>>, vector<8x288xf32>
    tpu.vector_store %arg13[%c16, %c0_17], %18 {strides = array<i32>} : memref<72x288xf32, #tpu.memory_space<vmem>>, vector<8x288xf32>,
    %c0_18 = arith.constant 0 : index
    %c18 = arith.constant 18 : index
    %20 = vector.load %arg11[%c0_18, %c18] : memref<8x342xf32, #tpu.memory_space<vmem>>, vector<8x288xf32>
    %c24 = arith.constant 24 : index
    %c0_19 = arith.constant 0 : index
    %21 = vector.load %arg13[%c24, %c0_19] : memref<72x288xf32, #tpu.memory_space<vmem>>, vector<8x288xf32>
    tpu.vector_store %arg13[%c24, %c0_19], %20 {strides = array<i32>} : memref<72x288xf32, #tpu.memory_space<vmem>>, vector<8x288xf32>,
    %c0_20 = arith.constant 0 : index
    %c19 = arith.constant 19 : index
    %22 = vector.load %arg11[%c0_20, %c19] : memref<8x342xf32, #tpu.memory_space<vmem>>, vector<8x288xf32>
    %c32 = arith.constant 32 : index
    %c0_21 = arith.constant 0 : index
    %23 = vector.load %arg13[%c32, %c0_21] : memref<72x288xf32, #tpu.memory_space<vmem>>, vector<8x288xf32>
    tpu.vector_store %arg13[%c32, %c0_21], %22 {strides = array<i32>} : memref<72x288xf32, #tpu.memory_space<vmem>>, vector<8x288xf32>,
    %c0_22 = arith.constant 0 : index
    %c20 = arith.constant 20 : index
    %24 = vector.load %arg11[%c0_22, %c20] : memref<8x342xf32, #tpu.memory_space<vmem>>, vector<8x288xf32>
    %c40 = arith.constant 40 : index
    %c0_23 = arith.constant 0 : index
    %25 = vector.load %arg13[%c40, %c0_23] : memref<72x288xf32, #tpu.memory_space<vmem>>, vector<8x288xf32>
    tpu.vector_store %arg13[%c40, %c0_23], %24 {strides = array<i32>} : memref<72x288xf32, #tpu.memory_space<vmem>>, vector<8x288xf32>,
    %c0_24 = arith.constant 0 : index
    %c36 = arith.constant 36 : index
    %26 = vector.load %arg11[%c0_24, %c36] : memref<8x342xf32, #tpu.memory_space<vmem>>, vector<8x288xf32>
    %c48 = arith.constant 48 : index
    %c0_25 = arith.constant 0 : index
    %27 = vector.load %arg13[%c48, %c0_25] : memref<72x288xf32, #tpu.memory_space<vmem>>, vector<8x288xf32>
    tpu.vector_store %arg13[%c48, %c0_25], %26 {strides = array<i32>} : memref<72x288xf32, #tpu.memory_space<vmem>>, vector<8x288xf32>,
    %c0_26 = arith.constant 0 : index
    %c37 = arith.constant 37 : index
    %28 = vector.load %arg11[%c0_26, %c37] : memref<8x342xf32, #tpu.memory_space<vmem>>, vector<8x288xf32>
    %c56 = arith.constant 56 : index
    %c0_27 = arith.constant 0 : index
    %29 = vector.load %arg13[%c56, %c0_27] : memref<72x288xf32, #tpu.memory_space<vmem>>, vector<8x288xf32>
    tpu.vector_store %arg13[%c56, %c0_27], %28 {strides = array<i32>} : memref<72x288xf32, #tpu.memory_space<vmem>>, vector<8x288xf32>,
    %c0_28 = arith.constant 0 : index
    %c38 = arith.constant 38 : index
    %30 = vector.load %arg11[%c0_28, %c38] : memref<8x342xf32, #tpu.memory_space<vmem>>, vector<8x288xf32>
    %c64 = arith.constant 64 : index
    %c0_29 = arith.constant 0 : index
    %31 = vector.load %arg13[%c64, %c0_29] : memref<72x288xf32, #tpu.memory_space<vmem>>, vector<8x288xf32>
    tpu.vector_store %arg13[%c64, %c0_29], %30 {strides = array<i32>} : memref<72x288xf32, #tpu.memory_space<vmem>>, vector<8x288xf32>,
    %c0_30 = arith.constant 0 : index
    %c0_31 = arith.constant 0 : index
    %32 = vector.load %arg8[%c0_30, %c0_31] : memref<8x72xf32, #tpu.memory_space<vmem>>, vector<8x72xf32>
    %c0_32 = arith.constant 0 : index
    %c0_33 = arith.constant 0 : index
    %33 = vector.load %arg13[%c0_32, %c0_33] : memref<72x288xf32, #tpu.memory_space<vmem>>, vector<72x288xf32>
    %cst_34 = arith.constant dense<0.000000e+00> : vector<8x288xf32>
    %34 = tpu.matmul %32, %33, %cst_34 {dimension_numbers = #tpu.dot_dimension_numbers<[1], [0], [0], [1], [0, 0, 1, 1], [], []>} : vector<8x72xf32>, vector<72x288xf32>, vector<8x288xf32> -> vector<8x288xf32>
    %c0_35 = arith.constant 0 : index
    %c0_36 = arith.constant 0 : index
    %35 = vector.load %arg6[%c0_35, %c0_36] : memref<8x1xf32, #tpu.memory_space<vmem>>, vector<8x1xf32>
    %36 = vector.broadcast %35 : vector<8x1xf32> to vector<8x288xf32>
    %37 = arith.mulf %34, %36 : vector<8x288xf32>
    %c0_37 = arith.constant 0 : index
    %c0_38 = arith.constant 0 : index
    %38 = vector.load %arg7[%c0_37, %c0_38] : memref<8x1xf32, #tpu.memory_space<vmem>>, vector<8x1xf32>
    %39 = vector.broadcast %38 : vector<8x1xf32> to vector<8x288xf32>
    %40 = arith.addf %37, %39 : vector<8x288xf32>
    %cst_39 = arith.constant 0.000000e+00 : f32
    %41 = vector.broadcast %cst_39 : f32 to vector<8x288xf32>
    %42 = arith.maximumf %40, %41 : vector<8x288xf32>
    %c0_40 = arith.constant 0 : index
    %c0_41 = arith.constant 0 : index
    %43 = vector.load %arg3[%c0_40, %c0_41] : memref<1x288xf32, #tpu.memory_space<vmem>>, vector<1x288xf32>
    %44 = vector.broadcast %43 : vector<1x288xf32> to vector<8x288xf32>
    %45 = arith.mulf %42, %44 : vector<8x288xf32>
    %cst_42 = arith.constant 0.000000e+00 : f32
    %46 = vector.broadcast %cst_42 : f32 to vector<8x19xf32>
    %c0_43 = arith.constant 0 : index
    %c0_44 = arith.constant 0 : index
    %47 = vector.load %arg12[%c0_43, %c0_44] : memref<8x342xf32, #tpu.memory_space<vmem>>, vector<8x19xf32>
    tpu.vector_store %arg12[%c0_43, %c0_44], %46 {strides = array<i32>} : memref<8x342xf32, #tpu.memory_space<vmem>>, vector<8x19xf32>,
    %cst_45 = arith.constant 0.000000e+00 : f32
    %48 = vector.broadcast %cst_45 : f32 to vector<8x35xf32>
    %c0_46 = arith.constant 0 : index
    %c307 = arith.constant 307 : index
    %49 = vector.load %arg12[%c0_46, %c307] : memref<8x342xf32, #tpu.memory_space<vmem>>, vector<8x35xf32>
    tpu.vector_store %arg12[%c0_46, %c307], %48 {strides = array<i32>} : memref<8x342xf32, #tpu.memory_space<vmem>>, vector<8x35xf32>,
    %c0_47 = arith.constant 0 : index
    %c19_48 = arith.constant 19 : index
    %50 = vector.load %arg12[%c0_47, %c19_48] : memref<8x342xf32, #tpu.memory_space<vmem>>, vector<8x288xf32>
    tpu.vector_store %arg12[%c0_47, %c19_48], %45 {strides = array<i32>} : memref<8x342xf32, #tpu.memory_space<vmem>>, vector<8x288xf32>,
    %c0_49 = arith.constant 0 : index
    %c0_50 = arith.constant 0 : index
    %51 = vector.load %arg12[%c0_49, %c0_50] : memref<8x342xf32, #tpu.memory_space<vmem>>, vector<8x288xf32>
    %c0_51 = arith.constant 0 : index
    %c0_52 = arith.constant 0 : index
    %52 = vector.load %arg14[%c0_51, %c0_52] : memref<80x288xf32, #tpu.memory_space<vmem>>, vector<8x288xf32>
    tpu.vector_store %arg14[%c0_51, %c0_52], %51 {strides = array<i32>} : memref<80x288xf32, #tpu.memory_space<vmem>>, vector<8x288xf32>,
    %c0_53 = arith.constant 0 : index
    %c1_54 = arith.constant 1 : index
    %53 = vector.load %arg12[%c0_53, %c1_54] : memref<8x342xf32, #tpu.memory_space<vmem>>, vector<8x288xf32>
    %c8_55 = arith.constant 8 : index
    %c0_56 = arith.constant 0 : index
    %54 = vector.load %arg14[%c8_55, %c0_56] : memref<80x288xf32, #tpu.memory_space<vmem>>, vector<8x288xf32>
    tpu.vector_store %arg14[%c8_55, %c0_56], %53 {strides = array<i32>} : memref<80x288xf32, #tpu.memory_space<vmem>>, vector<8x288xf32>,
    %c0_57 = arith.constant 0 : index
    %c2_58 = arith.constant 2 : index
    %55 = vector.load %arg12[%c0_57, %c2_58] : memref<8x342xf32, #tpu.memory_space<vmem>>, vector<8x288xf32>
    %c16_59 = arith.constant 16 : index
    %c0_60 = arith.constant 0 : index
    %56 = vector.load %arg14[%c16_59, %c0_60] : memref<80x288xf32, #tpu.memory_space<vmem>>, vector<8x288xf32>
    tpu.vector_store %arg14[%c16_59, %c0_60], %55 {strides = array<i32>} : memref<80x288xf32, #tpu.memory_space<vmem>>, vector<8x288xf32>,
    %c0_61 = arith.constant 0 : index
    %c18_62 = arith.constant 18 : index
    %57 = vector.load %arg12[%c0_61, %c18_62] : memref<8x342xf32, #tpu.memory_space<vmem>>, vector<8x288xf32>
    %c24_63 = arith.constant 24 : index
    %c0_64 = arith.constant 0 : index
    %58 = vector.load %arg14[%c24_63, %c0_64] : memref<80x288xf32, #tpu.memory_space<vmem>>, vector<8x288xf32>
    tpu.vector_store %arg14[%c24_63, %c0_64], %57 {strides = array<i32>} : memref<80x288xf32, #tpu.memory_space<vmem>>, vector<8x288xf32>,
    %c0_65 = arith.constant 0 : index
    %c19_66 = arith.constant 19 : index
    %59 = vector.load %arg12[%c0_65, %c19_66] : memref<8x342xf32, #tpu.memory_space<vmem>>, vector<8x288xf32>
    %c32_67 = arith.constant 32 : index
    %c0_68 = arith.constant 0 : index
    %60 = vector.load %arg14[%c32_67, %c0_68] : memref<80x288xf32, #tpu.memory_space<vmem>>, vector<8x288xf32>
    tpu.vector_store %arg14[%c32_67, %c0_68], %59 {strides = array<i32>} : memref<80x288xf32, #tpu.memory_space<vmem>>, vector<8x288xf32>,
    %c0_69 = arith.constant 0 : index
    %c20_70 = arith.constant 20 : index
    %61 = vector.load %arg12[%c0_69, %c20_70] : memref<8x342xf32, #tpu.memory_space<vmem>>, vector<8x288xf32>
    %c40_71 = arith.constant 40 : index
    %c0_72 = arith.constant 0 : index
    %62 = vector.load %arg14[%c40_71, %c0_72] : memref<80x288xf32, #tpu.memory_space<vmem>>, vector<8x288xf32>
    tpu.vector_store %arg14[%c40_71, %c0_72], %61 {strides = array<i32>} : memref<80x288xf32, #tpu.memory_space<vmem>>, vector<8x288xf32>,
    %c0_73 = arith.constant 0 : index
    %c36_74 = arith.constant 36 : index
    %63 = vector.load %arg12[%c0_73, %c36_74] : memref<8x342xf32, #tpu.memory_space<vmem>>, vector<8x288xf32>
    %c48_75 = arith.constant 48 : index
    %c0_76 = arith.constant 0 : index
    %64 = vector.load %arg14[%c48_75, %c0_76] : memref<80x288xf32, #tpu.memory_space<vmem>>, vector<8x288xf32>
    tpu.vector_store %arg14[%c48_75, %c0_76], %63 {strides = array<i32>} : memref<80x288xf32, #tpu.memory_space<vmem>>, vector<8x288xf32>,
    %c0_77 = arith.constant 0 : index
    %c37_78 = arith.constant 37 : index
    %65 = vector.load %arg12[%c0_77, %c37_78] : memref<8x342xf32, #tpu.memory_space<vmem>>, vector<8x288xf32>
    %c56_79 = arith.constant 56 : index
    %c0_80 = arith.constant 0 : index
    %66 = vector.load %arg14[%c56_79, %c0_80] : memref<80x288xf32, #tpu.memory_space<vmem>>, vector<8x288xf32>
    tpu.vector_store %arg14[%c56_79, %c0_80], %65 {strides = array<i32>} : memref<80x288xf32, #tpu.memory_space<vmem>>, vector<8x288xf32>,
    %c0_81 = arith.constant 0 : index
    %c38_82 = arith.constant 38 : index
    %67 = vector.load %arg12[%c0_81, %c38_82] : memref<8x342xf32, #tpu.memory_space<vmem>>, vector<8x288xf32>
    %c64_83 = arith.constant 64 : index
    %c0_84 = arith.constant 0 : index
    %68 = vector.load %arg14[%c64_83, %c0_84] : memref<80x288xf32, #tpu.memory_space<vmem>>, vector<8x288xf32>
    tpu.vector_store %arg14[%c64_83, %c0_84], %67 {strides = array<i32>} : memref<80x288xf32, #tpu.memory_space<vmem>>, vector<8x288xf32>,
    %c0_85 = arith.constant 0 : index
    %c19_86 = arith.constant 19 : index
    %69 = vector.load %arg11[%c0_85, %c19_86] : memref<8x342xf32, #tpu.memory_space<vmem>>, vector<8x288xf32>
    %c72 = arith.constant 72 : index
    %c0_87 = arith.constant 0 : index
    %70 = vector.load %arg14[%c72, %c0_87] : memref<80x288xf32, #tpu.memory_space<vmem>>, vector<8x288xf32>
    tpu.vector_store %arg14[%c72, %c0_87], %69 {strides = array<i32>} : memref<80x288xf32, #tpu.memory_space<vmem>>, vector<8x288xf32>,
    %c0_88 = arith.constant 0 : index
    %c0_89 = arith.constant 0 : index
    %71 = vector.load %arg9[%c0_88, %c0_89] : memref<8x80xf32, #tpu.memory_space<vmem>>, vector<8x80xf32>
    %c0_90 = arith.constant 0 : index
    %c0_91 = arith.constant 0 : index
    %72 = vector.load %arg14[%c0_90, %c0_91] : memref<80x288xf32, #tpu.memory_space<vmem>>, vector<80x288xf32>
    %cst_92 = arith.constant dense<0.000000e+00> : vector<8x288xf32>
    %73 = tpu.matmul %71, %72, %cst_92 {dimension_numbers = #tpu.dot_dimension_numbers<[1], [0], [0], [1], [0, 0, 1, 1], [], []>} : vector<8x80xf32>, vector<80x288xf32>, vector<8x288xf32> -> vector<8x288xf32>
    %c0_93 = arith.constant 0 : index
    %c0_94 = arith.constant 0 : index
    %c0_95 = arith.constant 0 : index
    %74 = vector.load %arg10[%c0_93, %c0_94, %c0_95] : memref<1x8x288xf32, #tpu.memory_space<vmem>>, vector<1x8x288xf32>
    %75 = vector.shape_cast %74 : vector<1x8x288xf32> to vector<8x288xf32>
    %76 = vector.shape_cast %73 : vector<8x288xf32> to vector<1x8x288xf32>
    tpu.vector_store %arg10[%c0_93, %c0_94, %c0_95], %76 {strides = array<i32>} : memref<1x8x288xf32, #tpu.memory_space<vmem>>, vector<1x8x288xf32>,
    return
  }
  func.func @transform_0(%arg0: i32) -> (i32, i32, i32) {
    %c0_i32 = arith.constant 0 : i32
    %c0_i32_0 = arith.constant 0 : i32
    %c0_i32_1 = arith.constant 0 : i32
    return %arg0, %c0_i32, %c0_i32_0 : i32, i32, i32
  }
  func.func @transform_1(%arg0: i32) -> (i32, i32) {
    %c0_i32 = arith.constant 0 : i32
    %c0_i32_0 = arith.constant 0 : i32
    %c0_i32_1 = arith.constant 0 : i32
    return %c0_i32, %c0_i32_0 : i32, i32
  }
  func.func @transform_2(%arg0: i32) -> (i32, i32) {
    %c0_i32 = arith.constant 0 : i32
    %c0_i32_0 = arith.constant 0 : i32
    %c0_i32_1 = arith.constant 0 : i32
    return %c0_i32, %c0_i32_0 : i32, i32
  }
  func.func @transform_3(%arg0: i32) -> (i32, i32) {
    %c0_i32 = arith.constant 0 : i32
    %c0_i32_0 = arith.constant 0 : i32
    %c0_i32_1 = arith.constant 0 : i32
    return %c0_i32, %c0_i32_0 : i32, i32
  }
  func.func @transform_4(%arg0: i32) -> (i32, i32) {
    %c0_i32 = arith.constant 0 : i32
    %c0_i32_0 = arith.constant 0 : i32
    %c0_i32_1 = arith.constant 0 : i32
    return %c0_i32, %c0_i32_0 : i32, i32
  }
  func.func @transform_5(%arg0: i32) -> (i32, i32) {
    %c0_i32 = arith.constant 0 : i32
    %c0_i32_0 = arith.constant 0 : i32
    %c0_i32_1 = arith.constant 0 : i32
    return %c0_i32, %c0_i32_0 : i32, i32
  }
  func.func @transform_6(%arg0: i32) -> (i32, i32) {
    %c0_i32 = arith.constant 0 : i32
    %c0_i32_0 = arith.constant 0 : i32
    %c0_i32_1 = arith.constant 0 : i32
    return %c0_i32, %c0_i32_0 : i32, i32
  }
  func.func @transform_7(%arg0: i32) -> (i32, i32) {
    %c0_i32 = arith.constant 0 : i32
    %c0_i32_0 = arith.constant 0 : i32
    %c0_i32_1 = arith.constant 0 : i32
    return %c0_i32, %c0_i32_0 : i32, i32
  }
  func.func @transform_8(%arg0: i32) -> (i32, i32) {
    %c0_i32 = arith.constant 0 : i32
    %c0_i32_0 = arith.constant 0 : i32
    %c0_i32_1 = arith.constant 0 : i32
    return %c0_i32, %c0_i32_0 : i32, i32
  }
  func.func @transform_9(%arg0: i32) -> (i32, i32, i32) {
    %c0_i32 = arith.constant 0 : i32
    %c0_i32_0 = arith.constant 0 : i32
    %c0_i32_1 = arith.constant 0 : i32
    return %arg0, %c0_i32, %c0_i32_0 : i32, i32, i32
  }
}

</mosaic_0001>

<llo_original>
// kernel: preres_unit_forward.1
$region0: #{preres_unit_forward.1}
  #allocation0 [shape = 'u32[]', space=smem, size = 0x4, offset = 0x4, fixed_abs, tag = 'smem constant byte address 0x4 - core index']
  #allocation1 [shape = 'u32[144,128]{1,0:T(1,128)}', space=vmem, size = 0x12000, scoped, tag = 'internal scratch']
  #allocation2 [shape = 'f32[8,342]{1,0:T(8,128)}', space=vmem, size = 0x3000, scoped, tag = 'scratch operand']
  #allocation3 [shape = 'f32[8,342]{1,0:T(8,128)}', space=vmem, size = 0x3000, scoped, tag = 'scratch operand']
  #allocation4 [shape = 'f32[72,288]{1,0:T(8,128)}', space=vmem, size = 0x1b000, scoped, tag = 'scratch operand']
  #allocation5 [shape = 'f32[80,288]{1,0:T(8,128)}', space=vmem, size = 0x1e000, scoped, tag = 'scratch operand']
  %s0 = inlined_call_operand.vmem [shape: f32[2,8,342], index: 0, kind: input, shape index: {}]
  %s1 = inlined_call_operand.vmem [shape: f32[1,342], index: 1, kind: input, shape index: {}]
  %s2 = inlined_call_operand.vmem [shape: f32[1,288], index: 2, kind: input, shape index: {}]
  %s3 = inlined_call_operand.vmem [shape: f32[8,1], index: 3, kind: input, shape index: {}]
  %s4 = inlined_call_operand.vmem [shape: f32[8,1], index: 4, kind: input, shape index: {}]
  %s5 = inlined_call_operand.vmem [shape: f32[8,1], index: 5, kind: input, shape index: {}]
  %s6 = inlined_call_operand.vmem [shape: f32[8,1], index: 6, kind: input, shape index: {}]
  %s7 = inlined_call_operand.vmem [shape: f32[8,72], index: 7, kind: input, shape index: {}]
  %s8 = inlined_call_operand.vmem [shape: f32[8,80], index: 8, kind: input, shape index: {}]
  %s9 = inlined_call_operand.vmem [shape: f32[2,8,288], index: 9, kind: output, shape index: {}]
  %s10 = sld [smem:[#allocation0]]
  $region69: #{preres_unit_forward.1} parent=0
    _
  %s12 = ssub.s32 1, %s10
  %s13 = scalar_select 0, %s12, %s10
  loop: start=0, step=1, limit=4
  $region2: #{preres_unit_forward.1} parent=0 // loop_pre_header
    _
  $region3: #{preres_unit_forward.1} parent=0 // loop_header
    %s15 = sphi 0, %s19
    %p16 = scmp.ge.s32.totalorder %s15, 4
    %s25 = sphi 0, %s27
    %s28 = sphi 0, %s25
    %s29 = sphi 0, %s28
    %s45 = sphi 0, %s29
    %s49 = sphi 0, %s49
    %s51 = sphi 0, %s49
    %s52 = sphi 0, %s51
    %s66 = sphi 0, %s52
    %s70 = sphi 0, %s70
    %s72 = sphi 0, %s70
    %s73 = sphi 0, %s72
    %s87 = sphi 0, %s73
    %s91 = sphi 0, %s91
    %s93 = sphi 0, %s91
    %s94 = sphi 0, %s93
    %s108 = sphi 0, %s94
    %s112 = sphi 0, %s112
    %s114 = sphi 0, %s112
    %s115 = sphi 0, %s114
    %s129 = sphi 0, %s115
    %s133 = sphi 0, %s133
    %s135 = sphi 0, %s133
    %s136 = sphi 0, %s135
    %s150 = sphi 0, %s136
    %s154 = sphi 0, %s154
    %s156 = sphi 0, %s154
    %s157 = sphi 0, %s156
    %s171 = sphi 0, %s157
    %s175 = sphi 0, %s175
    %s177 = sphi 0, %s175
    %s178 = sphi 0, %s177
    %s192 = sphi 0, %s178
    %s196 = sphi 0, %s196
    %s198 = sphi 0, %s196
    %s199 = sphi 0, %s198
    %s213 = sphi 0, %s199
    %s219 = sphi 0, %s221
    %s222 = sphi 0, %s219
    %s223 = sphi 0, %s222
    %s239 = sphi 0, %s223
  $region4: #{preres_unit_forward.1} parent=0 // loop_header_branch
    %18 = sbr.rel (%p16) target = $region8
  $region5: #{preres_unit_forward.1} parent=0 // loop_body
    %s20 = ssub.s32 %s15, 1
    %s21 = ssub.s32 %s15, 2
    %s22 = sadd.s32 %s15, 1
    %s23 = ssub.s32 %s15, %s22
    %p24 = scmp.eq.s32.totalorder %s23, 0
    %s26 = sadd.s32 %s25, 1
    %s27 = scalar_select %p24, %s25, %s26
    %p30 = pneg %p24
    %p31 = scmp.eq.s32.totalorder %s15, 1
    %p32 = por %p30, %p31
    %p33 = scmp.ne.s32.totalorder %s25, %s28
    %p34 = scmp.eq.s32.totalorder %s15, 0
    %p35 = por %p33, %p34
    %p36 = scmp.ne.s32.totalorder %s25, %s28
    %p37 = scmp.eq.s32.totalorder %s20, 1
    %p38 = por %p36, %p37
    %p39 = scmp.ne.s32.totalorder %s28, %s29
    %p40 = scmp.eq.s32.totalorder %s20, 0
    %p41 = por %p39, %p40
    %p42 = scmp.ne.s32.totalorder %s28, %s29
    %p43 = scmp.eq.s32.totalorder %s21, 1
    %p44 = por %p42, %p43
    %p46 = scmp.ne.s32.totalorder %s29, %s45
    %p47 = scmp.eq.s32.totalorder %s21, 0
    %p48 = por %p46, %p47
    %s50 = sadd.s32 %s49, 1
    %p53 = scmp.eq.s32.totalorder %s15, 1
    %p54 = scmp.ne.s32.totalorder %s49, %s51
    %p55 = scmp.eq.s32.totalorder %s15, 0
    %p56 = por %p54, %p55
    %p57 = scmp.ne.s32.totalorder %s49, %s51
    %p58 = scmp.eq.s32.totalorder %s20, 1
    %p59 = por %p57, %p58
    %p60 = scmp.ne.s32.totalorder %s51, %s52
    %p61 = scmp.eq.s32.totalorder %s20, 0
    %p62 = por %p60, %p61
    %p63 = scmp.ne.s32.totalorder %s51, %s52
    %p64 = scmp.eq.s32.totalorder %s21, 1
    %p65 = por %p63, %p64
    %p67 = scmp.ne.s32.totalorder %s52, %s66
    %p68 = scmp.eq.s32.totalorder %s21, 0
    %p69 = por %p67, %p68
    %s71 = sadd.s32 %s70, 1
    %p74 = scmp.eq.s32.totalorder %s15, 1
    %p75 = scmp.ne.s32.totalorder %s70, %s72
    %p76 = scmp.eq.s32.totalorder %s15, 0
    %p77 = por %p75, %p76
    %p78 = scmp.ne.s32.totalorder %s70, %s72
    %p79 = scmp.eq.s32.totalorder %s20, 1
    %p80 = por %p78, %p79
    %p81 = scmp.ne.s32.totalorder %s72, %s73
    %p82 = scmp.eq.s32.totalorder %s20, 0
    %p83 = por %p81, %p82
    %p84 = scmp.ne.s32.totalorder %s72, %s73
    %p85 = scmp.eq.s32.totalorder %s21, 1
    %p86 = por %p84, %p85
    %p88 = scmp.ne.s32.totalorder %s73, %s87
    %p89 = scmp.eq.s32.totalorder %s21, 0
    %p90 = por %p88, %p89
    %s92 = sadd.s32 %s91, 1
    %p95 = scmp.eq.s32.totalorder %s15, 1
    %p96 = scmp.ne.s32.totalorder %s91, %s93
    %p97 = scmp.eq.s32.totalorder %s15, 0
    %p98 = por %p96, %p97
    %p99 = scmp.ne.s32.totalorder %s91, %s93
    %p100 = scmp.eq.s32.totalorder %s20, 1
    %p101 = por %p99, %p100
    %p102 = scmp.ne.s32.totalorder %s93, %s94
    %p103 = scmp.eq.s32.totalorder %s20, 0
    %p104 = por %p102, %p103
    %p105 = scmp.ne.s32.totalorder %s93, %s94
    %p106 = scmp.eq.s32.totalorder %s21, 1
    %p107 = por %p105, %p106
    %p109 = scmp.ne.s32.totalorder %s94, %s108
    %p110 = scmp.eq.s32.totalorder %s21, 0
    %p111 = por %p109, %p110
    %s113 = sadd.s32 %s112, 1
    %p116 = scmp.eq.s32.totalorder %s15, 1
    %p117 = scmp.ne.s32.totalorder %s112, %s114
    %p118 = scmp.eq.s32.totalorder %s15, 0
    %p119 = por %p117, %p118
    %p120 = scmp.ne.s32.totalorder %s112, %s114
    %p121 = scmp.eq.s32.totalorder %s20, 1
    %p122 = por %p120, %p121
    %p123 = scmp.ne.s32.totalorder %s114, %s115
    %p124 = scmp.eq.s32.totalorder %s20, 0
    %p125 = por %p123, %p124
    %p126 = scmp.ne.s32.totalorder %s114, %s115
    %p127 = scmp.eq.s32.totalorder %s21, 1
    %p128 = por %p126, %p127
    %p130 = scmp.ne.s32.totalorder %s115, %s129
    %p131 = scmp.eq.s32.totalorder %s21, 0
    %p132 = por %p130, %p131
    %s134 = sadd.s32 %s133, 1
    %p137 = scmp.eq.s32.totalorder %s15, 1
    %p138 = scmp.ne.s32.totalorder %s133, %s135
    %p139 = scmp.eq.s32.totalorder %s15, 0
    %p140 = por %p138, %p139
    %p141 = scmp.ne.s32.totalorder %s133, %s135
    %p142 = scmp.eq.s32.totalorder %s20, 1
    %p143 = por %p141, %p142
    %p144 = scmp.ne.s32.totalorder %s135, %s136
    %p145 = scmp.eq.s32.totalorder %s20, 0
    %p146 = por %p144, %p145
    %p147 = scmp.ne.s32.totalorder %s135, %s136
    %p148 = scmp.eq.s32.totalorder %s21, 1
    %p149 = por %p147, %p148
    %p151 = scmp.ne.s32.totalorder %s136, %s150
    %p152 = scmp.eq.s32.totalorder %s21, 0
    %p153 = por %p151, %p152
    %s155 = sadd.s32 %s154, 1
    %p158 = scmp.eq.s32.totalorder %s15, 1
    %p159 = scmp.ne.s32.totalorder %s154, %s156
    %p160 = scmp.eq.s32.totalorder %s15, 0
    %p161 = por %p159, %p160
    %p162 = scmp.ne.s32.totalorder %s154, %s156
    %p163 = scmp.eq.s32.totalorder %s20, 1
    %p164 = por %p162, %p163
    %p165 = scmp.ne.s32.totalorder %s156, %s157
    %p166 = scmp.eq.s32.totalorder %s20, 0
    %p167 = por %p165, %p166
    %p168 = scmp.ne.s32.totalorder %s156, %s157
    %p169 = scmp.eq.s32.totalorder %s21, 1
    %p170 = por %p168, %p169
    %p172 = scmp.ne.s32.totalorder %s157, %s171
    %p173 = scmp.eq.s32.totalorder %s21, 0
    %p174 = por %p172, %p173
    %s176 = sadd.s32 %s175, 1
    %p179 = scmp.eq.s32.totalorder %s15, 1
    %p180 = scmp.ne.s32.totalorder %s175, %s177
    %p181 = scmp.eq.s32.totalorder %s15, 0
    %p182 = por %p180, %p181
    %p183 = scmp.ne.s32.totalorder %s175, %s177
    %p184 = scmp.eq.s32.totalorder %s20, 1
    %p185 = por %p183, %p184
    %p186 = scmp.ne.s32.totalorder %s177, %s178
    %p187 = scmp.eq.s32.totalorder %s20, 0
    %p188 = por %p186, %p187
    %p189 = scmp.ne.s32.totalorder %s177, %s178
    %p190 = scmp.eq.s32.totalorder %s21, 1
    %p191 = por %p189, %p190
    %p193 = scmp.ne.s32.totalorder %s178, %s192
    %p194 = scmp.eq.s32.totalorder %s21, 0
    %p195 = por %p193, %p194
    %s197 = sadd.s32 %s196, 1
    %p200 = scmp.eq.s32.totalorder %s15, 1
    %p201 = scmp.ne.s32.totalorder %s196, %s198
    %p202 = scmp.eq.s32.totalorder %s15, 0
    %p203 = por %p201, %p202
    %p204 = scmp.ne.s32.totalorder %s196, %s198
    %p205 = scmp.eq.s32.totalorder %s20, 1
    %p206 = por %p204, %p205
    %p207 = scmp.ne.s32.totalorder %s198, %s199
    %p208 = scmp.eq.s32.totalorder %s20, 0
    %p209 = por %p207, %p208
    %p210 = scmp.ne.s32.totalorder %s198, %s199
    %p211 = scmp.eq.s32.totalorder %s21, 1
    %p212 = por %p210, %p211
    %p214 = scmp.ne.s32.totalorder %s199, %s213
    %p215 = scmp.eq.s32.totalorder %s21, 0
    %p216 = por %p214, %p215
    %s217 = ssub.s32 %s15, %s22
    %p218 = scmp.eq.s32.totalorder %s217, 0
    %s220 = sadd.s32 %s219, 1
    %s221 = scalar_select %p218, %s219, %s220
    %p224 = pneg %p218
    %p225 = scmp.eq.s32.totalorder %s15, 1
    %p226 = por %p224, %p225
    %p227 = scmp.ne.s32.totalorder %s219, %s222
    %p228 = scmp.eq.s32.totalorder %s15, 0
    %p229 = por %p227, %p228
    %p230 = scmp.ne.s32.totalorder %s219, %s222
    %p231 = scmp.eq.s32.totalorder %s20, 1
    %p232 = por %p230, %p231
    %p233 = scmp.ne.s32.totalorder %s222, %s223
    %p234 = scmp.eq.s32.totalorder %s20, 0
    %p235 = por %p233, %p234
    %p236 = scmp.ne.s32.totalorder %s222, %s223
    %p237 = scmp.eq.s32.totalorder %s21, 1
    %p238 = por %p236, %p237
    %p240 = scmp.ne.s32.totalorder %s223, %s239
    %p241 = scmp.eq.s32.totalorder %s21, 0
    %p242 = por %p240, %p241
    %p243 = scmp.le.s32.totalorder 1, %s15
    %p244 = scmp.lt.s32.totalorder %s15, 3
    %p245 = pnand %p243, %p244
    %p246 = pneg %p245
    // Predicated region
    $region9: #{preres_unit_forward.1} parent=5 // pred_check
      _
    $region10: #{preres_unit_forward.1} parent=5 // pred_check_branch
      %248 = sbr.rel (%p245) target = $region12
    $region11: #{preres_unit_forward.1} parent=5 // pred_region
      %s249 = ssub.s32 %s15, 1
      // Predicated region
      $region13: #{preres_unit_forward.1} parent=11 // pred_check
        %p250 = pneg %p62
      $region14: #{preres_unit_forward.1} parent=11 // pred_check_branch
        %252 = sbr.rel (%p250) target = $region16
      $region15: #{preres_unit_forward.1} parent=11 // pred_region
        _
      $region16: #{preres_unit_forward.1} parent=11 // pred_fallthru
        _
      // Predicated region
      $region17: #{preres_unit_forward.1} parent=11 // pred_check
        %p253 = pneg %p83
      $region18: #{preres_unit_forward.1} parent=11 // pred_check_branch
        %255 = sbr.rel (%p253) target = $region20
      $region19: #{preres_unit_forward.1} parent=11 // pred_region
        _
      $region20: #{preres_unit_forward.1} parent=11 // pred_fallthru
        _
      // Predicated region
      $region21: #{preres_unit_forward.1} parent=11 // pred_check
        %p256 = pneg %p104
      $region22: #{preres_unit_forward.1} parent=11 // pred_check_branch
        %258 = sbr.rel (%p256) target = $region24
      $region23: #{preres_unit_forward.1} parent=11 // pred_region
        _
      $region24: #{preres_unit_forward.1} parent=11 // pred_fallthru
        _
      // Predicated region
      $region25: #{preres_unit_forward.1} parent=11 // pred_check
        %p259 = pneg %p125
      $region26: #{preres_unit_forward.1} parent=11 // pred_check_branch
        %261 = sbr.rel (%p259) target = $region28
      $region27: #{preres_unit_forward.1} parent=11 // pred_region
        _
      $region28: #{preres_unit_forward.1} parent=11 // pred_fallthru
        _
      // Predicated region
      $region29: #{preres_unit_forward.1} parent=11 // pred_check
        %p262 = pneg %p146
      $region30: #{preres_unit_forward.1} parent=11 // pred_check_branch
        %264 = sbr.rel (%p262) target = $region32
      $region31: #{preres_unit_forward.1} parent=11 // pred_region
        _
      $region32: #{preres_unit_forward.1} parent=11 // pred_fallthru
        _
      // Predicated region
      $region33: #{preres_unit_forward.1} parent=11 // pred_check
        %p265 = pneg %p167
      $region34: #{preres_unit_forward.1} parent=11 // pred_check_branch
        %267 = sbr.rel (%p265) target = $region36
      $region35: #{preres_unit_forward.1} parent=11 // pred_region
        _
      $region36: #{preres_unit_forward.1} parent=11 // pred_fallthru
        _
      // Predicated region
      $region37: #{preres_unit_forward.1} parent=11 // pred_check
        %p268 = pneg %p188
      $region38: #{preres_unit_forward.1} parent=11 // pred_check_branch
        %270 = sbr.rel (%p268) target = $region40
      $region39: #{preres_unit_forward.1} parent=11 // pred_region
        _
      $region40: #{preres_unit_forward.1} parent=11 // pred_fallthru
        _
      // Predicated region
      $region41: #{preres_unit_forward.1} parent=11 // pred_check
        %p271 = pneg %p209
      $region42: #{preres_unit_forward.1} parent=11 // pred_check_branch
        %273 = sbr.rel (%p271) target = $region44
      $region43: #{preres_unit_forward.1} parent=11 // pred_region
        _
      $region44: #{preres_unit_forward.1} parent=11 // pred_fallthru
        _
    $region12: #{preres_unit_forward.1} parent=5 // pred_fallthru
      _
    %p274 = scmp.lt.s32.totalorder %s15, 2
    // Predicated region
    $region45: #{preres_unit_forward.1} parent=5 // pred_check
      %p275 = pneg %p274
    $region46: #{preres_unit_forward.1} parent=5 // pred_check_branch
      %277 = sbr.rel (%p275) target = $region48
    $region47: #{preres_unit_forward.1} parent=5 // pred_region
      // Predicated region
      $region49: #{preres_unit_forward.1} parent=47 // pred_check
        %p278 = pneg %p35
      $region50: #{preres_unit_forward.1} parent=47 // pred_check_branch
        %280 = sbr.rel (%p278) target = $region52
      $region51: #{preres_unit_forward.1} parent=47 // pred_region
        %p281 = scmp.lt.s32.totalorder %s15, 1
        %s282 = scalar_select %p281, %s15, 1
        %s283 = smul.addr %s282, 3
        %s284 = smul.addr %s283, 8
        %s285 = scalar_lea.vmem %s0, %s284
      $region52: #{preres_unit_forward.1} parent=47 // pred_fallthru
        _
    $region48: #{preres_unit_forward.1} parent=5 // pred_fallthru
      _
    %p286 = scmp.le.s32.totalorder 1, %s15
    %p287 = scmp.lt.s32.totalorder %s15, 3
    %p288 = pnand %p286, %p287
    %p289 = pneg %p288
    // Predicated region
    $region53: #{preres_unit_forward.1} parent=5 // pred_check
      _
    $region54: #{preres_unit_forward.1} parent=5 // pred_check_branch
      %291 = sbr.rel (%p288) target = $region56
    $region55: #{preres_unit_forward.1} parent=5 // pred_region
      %s292 = ssub.s32 %s15, 1
      %p293 = scmp.lt.s32.totalorder %s20, 1
      %s294 = scalar_select %p293, %s20, 1
      %s295 = smul.addr %s294, 3
      %s296 = smul.addr %s295, 8
      %s297 = scalar_lea.vmem %s0, %s296
      %p298 = pneg %p41
      %p299 = pneg %p38
      %p300 = pneg %p62
      %p301 = pneg %p59
      %p302 = pneg %p83
      %p303 = pneg %p80
      %p304 = pneg %p104
      %p305 = pneg %p101
      %p306 = pneg %p125
      %p307 = pneg %p122
      %p308 = pneg %p146
      %p309 = pneg %p143
      %p310 = pneg %p167
      %p311 = pneg %p164
      %p312 = pneg %p188
      %p313 = pneg %p185
      %p314 = pneg %p209
      %p315 = pneg %p206
      %p316 = pneg %p235
      %p317 = pneg %p232
      %p318 = scmp.lt.s32.totalorder %s20, 1
      %s319 = scalar_select %p318, %s20, 1
      %s320 = smul.addr %s319, 3
      %s321 = smul.addr %s320, 8
      %s322 = scalar_lea.vmem %s9, %s321
      %p323 = scmp.lt.s32.totalorder %s20, 1
      %s324 = scalar_select %p323, %s20, 1
      %s325 = smul.addr %s324, 3
      %s326 = smul.addr %s325, 8
      %s327 = scalar_lea.vmem %s0, %s326
      %p328 = scmp.lt.s32.totalorder %s20, 1
      %s329 = scalar_select %p328, %s20, 1
      %s330 = smul.addr %s329, 3
      %s331 = smul.addr %s330, 8
      %s332 = scalar_lea.vmem %s9, %s331
      %v333 = vld [vmem:[%s327] sm:$0xff]
      %v334 = vld [vmem:[%s327 + $0x8] sm:$0xff]
      %v335 = vld [vmem:[%s327 + $0x10] sm:$0xff]
      %v336 = vld [vmem:[%s3] sm:$0xff]
      %338 = vset.pattern.permute.xlu0 0
      %339 = vperm.xlu0 %338, %v336
      %v340 = vpop.permute.xlu0 %339
      %v342 = vmul.f32 %v333, %v340
      %v343 = vmul.f32 %v334, %v340
      %v344 = vmul.f32 %v335, %v340
      %v345 = vld [vmem:[%s4] sm:$0xff]
      %347 = vset.pattern.permute.xlu0 0
      %348 = vperm.xlu0 %347, %v345
      %v349 = vpop.permute.xlu0 %348
      %v351 = vadd.f32 %v342, %v349
      %v352 = vadd.f32 %v343, %v349
      %v353 = vadd.f32 %v344, %v349
      %v354 = vmax.f32 %v351, 0.0
      %v355 = vmax.f32 %v352, 0.0
      %v356 = vmax.f32 %v353, 0.0
      %v357 = vld [vmem:[%s1] sm:$0x7]
      %v359 = vlaneseq
      %v360 = vshrl.u32 %v359, 7
      %v361 = vsub.s32 0, %v360
      %v362 = vrot.slane %v357, %v361
      %v363 = vlaneseq
      %v364 = vshrl.u32 %v363, 7
      %v365 = vsub.s32 1, %v364
      %v366 = vrot.slane %v357, %v365
      %v367 = vlaneseq
      %v368 = vshrl.u32 %v367, 7
      %v369 = vsub.s32 2, %v368
      %v370 = vrot.slane %v357, %v369
      %v374 = vmul.f32 %v354, %v362
      %v375 = vmul.f32 %v355, %v366
      %v376 = vmul.f32 %v356, %v370
      %377 = vst [vmem:[#allocation2] sm:$0xff] %v374
      %378 = vst [vmem:[#allocation2 + $0x8] sm:$0xff] %v375
      %vm379 = vcmask 703488
      %380 = vst.msk [vmem:[#allocation2 + $0x10] sm:$0xff] %vm379, %v376
      %v381 = vld [vmem:[#allocation2] sm:$0xff]
      %v382 = vld [vmem:[#allocation2 + $0x8] sm:$0xff]
      %v383 = vld [vmem:[#allocation2 + $0x10] sm:$0xff]
      %384 = vst [vmem:[#allocation4] sm:$0xff] %v381
      %385 = vst [vmem:[#allocation4 + $0x8] sm:$0xff] %v382
      %vm386 = vcmask 261120
      %387 = vst.msk [vmem:[#allocation4 + $0x10] sm:$0xff] %vm386, %v383
      %v388 = vld [vmem:[#allocation2] sm:$0xff]
      %v389 = vld [vmem:[#allocation2 + $0x8] sm:$0xff]
      %v390 = vld [vmem:[#allocation2 + $0x10] sm:$0xff]
      %394 = vrot.lane.b32.xlu0 %v388, 127
      %v395 = vpop.permute.xlu0 %394
      %396 = vrot.lane.b32.xlu0 %v389, 127
      %v397 = vpop.permute.xlu0 %396
      %398 = vrot.lane.b32.xlu0 %v390, 127
      %v399 = vpop.permute.xlu0 %398
      %vm400 = vcmask 1039360
      %v401 = vsel %vm400, %v395, %v397
      %v402 = vsel %vm400, %v397, %v399
      %406 = vst [vmem:[#allocation4 + $0x18] sm:$0xff] %v401
      %407 = vst [vmem:[#allocation4 + $0x20] sm:$0xff] %v402
      %408 = vst.msk [vmem:[#allocation4 + $0x28] sm:$0xff] %vm386, %v399
      %v409 = vld [vmem:[#allocation2] sm:$0xff]
      %v410 = vld [vmem:[#allocation2 + $0x8] sm:$0xff]
      %v411 = vld [vmem:[#allocation2 + $0x10] sm:$0xff]
      %415 = vrot.lane.b32.xlu0 %v409, 126
      %v416 = vpop.permute.xlu0 %415
      %417 = vrot.lane.b32.xlu0 %v410, 126
      %v418 = vpop.permute.xlu0 %417
      %419 = vrot.lane.b32.xlu0 %v411, 126
      %v420 = vpop.permute.xlu0 %419
      %vm421 = vcmask 1031168
      %v422 = vsel %vm421, %v416, %v418
      %v423 = vsel %vm421, %v418, %v420
      %427 = vst [vmem:[#allocation4 + $0x30] sm:$0xff] %v422
      %428 = vst [vmem:[#allocation4 + $0x38] sm:$0xff] %v423
      %429 = vst.msk [vmem:[#allocation4 + $0x40] sm:$0xff] %vm386, %v420
      %v430 = vld [vmem:[#allocation2] sm:$0xff]
      %v431 = vld [vmem:[#allocation2 + $0x8] sm:$0xff]
      %v432 = vld [vmem:[#allocation2 + $0x10] sm:$0xff]
      %436 = vrot.lane.b32.xlu0 %v430, 110
      %v437 = vpop.permute.xlu0 %436
      %438 = vrot.lane.b32.xlu0 %v431, 110
      %v439 = vpop.permute.xlu0 %438
      %440 = vrot.lane.b32.xlu0 %v432, 110
      %v441 = vpop.permute.xlu0 %440
      %vm442 = vcmask 900096
      %v443 = vsel %vm442, %v437, %v439
      %v444 = vsel %vm442, %v439, %v441
      %448 = vst [vmem:[#allocation4 + $0x48] sm:$0xff] %v443
      %449 = vst [vmem:[#allocation4 + $0x50] sm:$0xff] %v444
      %450 = vst.msk [vmem:[#allocation4 + $0x58] sm:$0xff] %vm386, %v441
      %v451 = vld [vmem:[#allocation2] sm:$0xff]
      %v452 = vld [vmem:[#allocation2 + $0x8] sm:$0xff]
      %v453 = vld [vmem:[#allocation2 + $0x10] sm:$0xff]
      %457 = vrot.lane.b32.xlu0 %v451, 109
      %v458 = vpop.permute.xlu0 %457
      %459 = vrot.lane.b32.xlu0 %v452, 109
      %v460 = vpop.permute.xlu0 %459
      %461 = vrot.lane.b32.xlu0 %v453, 109
      %v462 = vpop.permute.xlu0 %461
      %vm463 = vcmask 891904
      %v464 = vsel %vm463, %v458, %v460
      %v465 = vsel %vm463, %v460, %v462
      %469 = vst [vmem:[#allocation4 + $0x60] sm:$0xff] %v464
      %470 = vst [vmem:[#allocation4 + $0x68] sm:$0xff] %v465
      %471 = vst.msk [vmem:[#allocation4 + $0x70] sm:$0xff] %vm386, %v462
      %v472 = vld [vmem:[#allocation2] sm:$0xff]
      %v473 = vld [vmem:[#allocation2 + $0x8] sm:$0xff]
      %v474 = vld [vmem:[#allocation2 + $0x10] sm:$0xff]
      %478 = vrot.lane.b32.xlu0 %v472, 108
      %v479 = vpop.permute.xlu0 %478
      %480 = vrot.lane.b32.xlu0 %v473, 108
      %v481 = vpop.permute.xlu0 %480
      %482 = vrot.lane.b32.xlu0 %v474, 108
      %v483 = vpop.permute.xlu0 %482
      %vm484 = vcmask 883712
      %v485 = vsel %vm484, %v479, %v481
      %v486 = vsel %vm484, %v481, %v483
      %490 = vst [vmem:[#allocation4 + $0x78] sm:$0xff] %v485
      %491 = vst [vmem:[#allocation4 + $0x80] sm:$0xff] %v486
      %492 = vst.msk [vmem:[#allocation4 + $0x88] sm:$0xff] %vm386, %v483
      %v493 = vld [vmem:[#allocation2] sm:$0xff]
      %v494 = vld [vmem:[#allocation2 + $0x8] sm:$0xff]
      %v495 = vld [vmem:[#allocation2 + $0x10] sm:$0xff]
      %499 = vrot.lane.b32.xlu0 %v493, 92
      %v500 = vpop.permute.xlu0 %499
      %501 = vrot.lane.b32.xlu0 %v494, 92
      %v502 = vpop.permute.xlu0 %501
      %503 = vrot.lane.b32.xlu0 %v495, 92
      %v504 = vpop.permute.xlu0 %503
      %vm505 = vcmask 752640
      %v506 = vsel %vm505, %v500, %v502
      %v507 = vsel %vm505, %v502, %v504
      %511 = vst [vmem:[#allocation4 + $0x90] sm:$0xff] %v506
      %512 = vst [vmem:[#allocation4 + $0x98] sm:$0xff] %v507
      %513 = vst.msk [vmem:[#allocation4 + $0xa0] sm:$0xff] %vm386, %v504
      %v514 = vld [vmem:[#allocation2] sm:$0xff]
      %v515 = vld [vmem:[#allocation2 + $0x8] sm:$0xff]
      %v516 = vld [vmem:[#allocation2 + $0x10] sm:$0xff]
      %520 = vrot.lane.b32.xlu0 %v514, 91
      %v521 = vpop.permute.xlu0 %520
      %522 = vrot.lane.b32.xlu0 %v515, 91
      %v523 = vpop.permute.xlu0 %522
      %524 = vrot.lane.b32.xlu0 %v516, 91
      %v525 = vpop.permute.xlu0 %524
      %vm526 = vcmask 744448
      %v527 = vsel %vm526, %v521, %v523
      %v528 = vsel %vm526, %v523, %v525
      %532 = vst [vmem:[#allocation4 + $0xa8] sm:$0xff] %v527
      %533 = vst [vmem:[#allocation4 + $0xb0] sm:$0xff] %v528
      %534 = vst.msk [vmem:[#allocation4 + $0xb8] sm:$0xff] %vm386, %v525
      %v535 = vld [vmem:[#allocation2] sm:$0xff]
      %v536 = vld [vmem:[#allocation2 + $0x8] sm:$0xff]
      %v537 = vld [vmem:[#allocation2 + $0x10] sm:$0xff]
      %541 = vrot.lane.b32.xlu0 %v535, 90
      %v542 = vpop.permute.xlu0 %541
      %543 = vrot.lane.b32.xlu0 %v536, 90
      %v544 = vpop.permute.xlu0 %543
      %545 = vrot.lane.b32.xlu0 %v537, 90
      %v546 = vpop.permute.xlu0 %545
      %vm547 = vcmask 736256
      %v548 = vsel %vm547, %v542, %v544
      %v549 = vsel %vm547, %v544, %v546
      %553 = vst [vmem:[#allocation4 + $0xc0] sm:$0xff] %v548
      %554 = vst [vmem:[#allocation4 + $0xc8] sm:$0xff] %v549
      %555 = vst.msk [vmem:[#allocation4 + $0xd0] sm:$0xff] %vm386, %v546
      %v556 = vld [vmem:[%s7] sm:$0xff]
      %v557 = vld [vmem:[#allocation4] sm:$0xff]
      %v558 = vld [vmem:[#allocation4 + $0x8] sm:$0xff]
      %v559 = vld [vmem:[#allocation4 + $0x10] sm:$0xff]
      %v560 = vld [vmem:[#allocation4 + $0x18] sm:$0xff]
      %v561 = vld [vmem:[#allocation4 + $0x20] sm:$0xff]
      %v562 = vld [vmem:[#allocation4 + $0x28] sm:$0xff]
      %v563 = vld [vmem:[#allocation4 + $0x30] sm:$0xff]
      %v564 = vld [vmem:[#allocation4 + $0x38] sm:$0xff]
      %v565 = vld [vmem:[#allocation4 + $0x40] sm:$0xff]
      %v566 = vld [vmem:[#allocation4 + $0x48] sm:$0xff]
      %v567 = vld [vmem:[#allocation4 + $0x50] sm:$0xff]
      %v568 = vld [vmem:[#allocation4 + $0x58] sm:$0xff]
      %v569 = vld [vmem:[#allocation4 + $0x60] sm:$0xff]
      %v570 = vld [vmem:[#allocation4 + $0x68] sm:$0xff]
      %v571 = vld [vmem:[#allocation4 + $0x70] sm:$0xff]
      %v572 = vld [vmem:[#allocation4 + $0x78] sm:$0xff]
      %v573 = vld [vmem:[#allocation4 + $0x80] sm:$0xff]
      %v574 = vld [vmem:[#allocation4 + $0x88] sm:$0xff]
      %v575 = vld [vmem:[#allocation4 + $0x90] sm:$0xff]
      %v576 = vld [vmem:[#allocation4 + $0x98] sm:$0xff]
      %v577 = vld [vmem:[#allocation4 + $0xa0] sm:$0xff]
      %v578 = vld [vmem:[#allocation4 + $0xa8] sm:$0xff]
      %v579 = vld [vmem:[#allocation4 + $0xb0] sm:$0xff]
      %v580 = vld [vmem:[#allocation4 + $0xb8] sm:$0xff]
      %v581 = vld [vmem:[#allocation4 + $0xc0] sm:$0xff]
      %v582 = vld [vmem:[#allocation4 + $0xc8] sm:$0xff]
      %v583 = vld [vmem:[#allocation4 + $0xd0] sm:$0xff]
      %vm584 = vcmask 588800
      %v586 = vsel %vm584, %v556, 0
      %588 = vmatprep.subr.mxu0 %v558
      %589 = vmatpush1.msra.mxu0 %v557
      %590 = vmatprep.subr.mxu0 %v561
      %591 = vmatpush1.msra.mxu0 %v560
      %592 = vmatprep.subr.mxu0 %v564
      %593 = vmatpush1.msra.mxu0 %v563
      %594 = vmatprep.subr.mxu0 %v567
      %595 = vmatpush1.msra.mxu0 %v566
      %596 = vmatprep.subr.mxu0 %v570
      %597 = vmatpush1.msra.mxu0 %v569
      %598 = vmatprep.subr.mxu0 %v573
      %599 = vmatpush1.msra.mxu0 %v572
      %600 = vmatprep.subr.mxu0 %v576
      %601 = vmatpush1.msra.mxu0 %v575
      %602 = vmatprep.subr.mxu0 %v579
      %603 = vmatpush1.msra.mxu0 %v578
      %604 = vmatprep.subr.mxu0 %v582
      %605 = vmatpush1.msra.mxu0 %v581
      %606 = vmatprep.subr.mxu0 0.0
      %607 = vmatpush1.msra.mxu0 0.0
      %608 = vmatprep.subr.mxu0 0.0
      %609 = vmatpush1.msra.mxu0 0.0
      %610 = vmatprep.subr.mxu0 0.0
      %611 = vmatpush1.msra.mxu0 0.0
      %612 = vmatprep.subr.mxu0 0.0
      %613 = vmatpush1.msra.mxu0 0.0
      %614 = vmatprep.subr.mxu0 0.0
      %615 = vmatpush1.msra.mxu0 0.0
      %616 = vmatprep.subr.mxu0 0.0
      %617 = vmatpush1.msra.mxu0 0.0
      %618 = vmatprep.subr.mxu0 0.0
      %619 = vmatpush1.msra.mxu0 0.0
      %620 = vmatprep.subr.mxu0 0.0
      %621 = vmatpush1.msra.mxu0 0.0
      %622 = vmatprep.subr.mxu0 0.0
      %623 = vmatpush1.msra.mxu0 0.0
      %624 = vmatprep.subr.mxu0 0.0
      %625 = vmatpush1.msra.mxu0 0.0
      %626 = vmatprep.subr.mxu0 0.0
      %627 = vmatpush1.msra.mxu0 0.0
      %628 = vmatprep.subr.mxu0 0.0
      %629 = vmatpush1.msra.mxu0 0.0
      %630 = vmatprep.subr.mxu0 0.0
      %631 = vmatpush1.msra.mxu0 0.0
      %632 = vmatprep.subr.mxu0 0.0
      %633 = vmatpush1.msra.mxu0 0.0
      %634 = vmatprep.subr.mxu0 0.0
      %635 = vmatpush1.msra.mxu0 0.0
      %636 = vmatprep.subr.mxu0 0.0
      %637 = vmatpush1.msra.mxu0 0.0
      %638 = vmatprep.subr.mxu0 0.0
      %639 = vmatpush1.msra.mxu0 0.0
      %640 = vmatprep.subr.mxu0 0.0
      %641 = vmatpush1.msra.mxu0 0.0
      %642 = vmatprep.subr.mxu0 0.0
      %643 = vmatpush1.msra.mxu0 0.0
      %644 = vmatprep.subr.mxu0 0.0
      %645 = vmatpush1.msra.mxu0 0.0
      %646 = vmatprep.subr.mxu0 0.0
      %647 = vmatpush1.msra.mxu0 0.0
      %648 = vmatprep.subr.mxu0 0.0
      %649 = vmatpush1.msra.mxu0 0.0
      %650 = vmatprep.subr.mxu0 0.0
      %651 = vmatpush1.msra.mxu0 0.0
      %652 = vmatprep.mubr.f32.mxu0 0.0
      %653 = vmatmul.mubr.f32.gmra.mrb[0].mxu0 %v586
      %v654 = vpop.f32.mrb[0].mxu0
      %v655 = vadd.f32 0.0, %v654
      %v656 = vpop.f32.mrb[0].mxu0
      %v657 = vadd.f32 0.0, %v656
      %658 = vdwg.mxu0
      %659 = vmatprep.subr.mxu0 0.0
      %660 = vmatpush1.msra.mxu0 %v559
      %661 = vmatprep.subr.mxu0 0.0
      %662 = vmatpush1.msra.mxu0 %v562
      %663 = vmatprep.subr.mxu0 0.0
      %664 = vmatpush1.msra.mxu0 %v565
      %665 = vmatprep.subr.mxu0 0.0
      %666 = vmatpush1.msra.mxu0 %v568
      %667 = vmatprep.subr.mxu0 0.0
      %668 = vmatpush1.msra.mxu0 %v571
      %669 = vmatprep.subr.mxu0 0.0
      %670 = vmatpush1.msra.mxu0 %v574
      %671 = vmatprep.subr.mxu0 0.0
      %672 = vmatpush1.msra.mxu0 %v577
      %673 = vmatprep.subr.mxu0 0.0
      %674 = vmatpush1.msra.mxu0 %v580
      %675 = vmatprep.subr.mxu0 0.0
      %676 = vmatpush1.msra.mxu0 %v583
      %677 = vmatprep.subr.mxu0 0.0
      %678 = vmatpush1.msra.mxu0 0.0
      %679 = vmatprep.subr.mxu0 0.0
      %680 = vmatpush1.msra.mxu0 0.0
      %681 = vmatprep.subr.mxu0 0.0
      %682 = vmatpush1.msra.mxu0 0.0
      %683 = vmatprep.subr.mxu0 0.0
      %684 = vmatpush1.msra.mxu0 0.0
      %685 = vmatprep.subr.mxu0 0.0
      %686 = vmatpush1.msra.mxu0 0.0
      %687 = vmatprep.subr.mxu0 0.0
      %688 = vmatpush1.msra.mxu0 0.0
      %689 = vmatprep.subr.mxu0 0.0
      %690 = vmatpush1.msra.mxu0 0.0
      %691 = vmatprep.subr.mxu0 0.0
      %692 = vmatpush1.msra.mxu0 0.0
      %693 = vmatprep.subr.mxu0 0.0
      %694 = vmatpush1.msra.mxu0 0.0
      %695 = vmatprep.subr.mxu0 0.0
      %696 = vmatpush1.msra.mxu0 0.0
      %697 = vmatprep.subr.mxu0 0.0
      %698 = vmatpush1.msra.mxu0 0.0
      %699 = vmatprep.subr.mxu0 0.0
      %700 = vmatpush1.msra.mxu0 0.0
      %701 = vmatprep.subr.mxu0 0.0
      %702 = vmatpush1.msra.mxu0 0.0
      %703 = vmatprep.subr.mxu0 0.0
      %704 = vmatpush1.msra.mxu0 0.0
      %705 = vmatprep.subr.mxu0 0.0
      %706 = vmatpush1.msra.mxu0 0.0
      %707 = vmatprep.subr.mxu0 0.0
      %708 = vmatpush1.msra.mxu0 0.0
      %709 = vmatprep.subr.mxu0 0.0
      %710 = vmatpush1.msra.mxu0 0.0
      %711 = vmatprep.subr.mxu0 0.0
      %712 = vmatpush1.msra.mxu0 0.0
      %713 = vmatprep.subr.mxu0 0.0
      %714 = vmatpush1.msra.mxu0 0.0
      %715 = vmatprep.subr.mxu0 0.0
      %716 = vmatpush1.msra.mxu0 0.0
      %717 = vmatprep.subr.mxu0 0.0
      %718 = vmatpush1.msra.mxu0 0.0
      %719 = vmatprep.subr.mxu0 0.0
      %720 = vmatpush1.msra.mxu0 0.0
      %721 = vmatprep.subr.mxu0 0.0
      %722 = vmatpush1.msra.mxu0 0.0
      %723 = vmatprep.mubr.f32.mxu0 0.0
      %724 = vmatmul.mubr.f32.gmra.mrb[0].mxu0 %v586
      %v725 = vpop.f32.mrb[0].mxu0
      %v726 = vadd.f32 0.0, %v725
      %v727 = vpop.f32.mrb[0].mxu0
      %728 = vdwg.mxu0
      %v729 = vld [vmem:[%s5] sm:$0xff]
      %731 = vset.pattern.permute.xlu0 0
      %732 = vperm.xlu0 %731, %v729
      %v733 = vpop.permute.xlu0 %732
      %v735 = vmul.f32 %v655, %v733
      %v736 = vmul.f32 %v657, %v733
      %v737 = vmul.f32 %v726, %v733
      %v738 = vld [vmem:[%s6] sm:$0xff]
      %740 = vset.pattern.permute.xlu0 0
      %741 = vperm.xlu0 %740, %v738
      %v742 = vpop.permute.xlu0 %741
      %v744 = vadd.f32 %v735, %v742
      %v745 = vadd.f32 %v736, %v742
      %v746 = vadd.f32 %v737, %v742
      %v747 = vmax.f32 %v744, 0.0
      %v748 = vmax.f32 %v745, 0.0
      %v749 = vmax.f32 %v746, 0.0
      %v750 = vld [vmem:[%s2] sm:$0x7]
      %v752 = vlaneseq
      %v753 = vshrl.u32 %v752, 7
      %v754 = vsub.s32 0, %v753
      %v755 = vrot.slane %v750, %v754
      %v756 = vlaneseq
      %v757 = vshrl.u32 %v756, 7
      %v758 = vsub.s32 1, %v757
      %v759 = vrot.slane %v750, %v758
      %v760 = vlaneseq
      %v761 = vshrl.u32 %v760, 7
      %v762 = vsub.s32 2, %v761
      %v763 = vrot.slane %v750, %v762
      %v767 = vmul.f32 %v747, %v755
      %v768 = vmul.f32 %v748, %v759
      %v769 = vmul.f32 %v749, %v763
      %vm770 = vcmask 154624
      %771 = vst.msk [vmem:[#allocation3] sm:$0xff] %vm770, 0.0
      %vm772 = vcmask 703896
      %773 = vst.msk [vmem:[#allocation3 + $0x10] sm:$0xff] %vm772, 0.0
      %777 = vrot.lane.b32.xlu0 %v767, 19
      %v778 = vpop.permute.xlu0 %777
      %779 = vrot.lane.b32.xlu0 %v768, 19
      %v780 = vpop.permute.xlu0 %779
      %781 = vrot.lane.b32.xlu0 %v769, 19
      %v782 = vpop.permute.xlu0 %781
      %v783 = vsel %vm770, %v778, %v780
      %v784 = vsel %vm770, %v780, %v782
      %vm788 = vcmask 1047704
      %789 = vst.msk [vmem:[#allocation3] sm:$0xff] %vm788, %v778
      %790 = vst [vmem:[#allocation3 + $0x8] sm:$0xff] %v783
      %vm791 = vcmask 416768
      %792 = vst.msk [vmem:[#allocation3 + $0x10] sm:$0xff] %vm791, %v784
      %v793 = vld [vmem:[#allocation3] sm:$0xff]
      %v794 = vld [vmem:[#allocation3 + $0x8] sm:$0xff]
      %v795 = vld [vmem:[#allocation3 + $0x10] sm:$0xff]
      %796 = vst [vmem:[#allocation5] sm:$0xff] %v793
      %797 = vst [vmem:[#allocation5 + $0x8] sm:$0xff] %v794
      %798 = vst.msk [vmem:[#allocation5 + $0x10] sm:$0xff] %vm386, %v795
      %v799 = vld [vmem:[#allocation3] sm:$0xff]
      %v800 = vld [vmem:[#allocation3 + $0x8] sm:$0xff]
      %v801 = vld [vmem:[#allocation3 + $0x10] sm:$0xff]
      %805 = vrot.lane.b32.xlu0 %v799, 127
      %v806 = vpop.permute.xlu0 %805
      %807 = vrot.lane.b32.xlu0 %v800, 127
      %v808 = vpop.permute.xlu0 %807
      %809 = vrot.lane.b32.xlu0 %v801, 127
      %v810 = vpop.permute.xlu0 %809
      %v811 = vsel %vm400, %v806, %v808
      %v812 = vsel %vm400, %v808, %v810
      %816 = vst [vmem:[#allocation5 + $0x18] sm:$0xff] %v811
      %817 = vst [vmem:[#allocation5 + $0x20] sm:$0xff] %v812
      %818 = vst.msk [vmem:[#allocation5 + $0x28] sm:$0xff] %vm386, %v810
      %v819 = vld [vmem:[#allocation3] sm:$0xff]
      %v820 = vld [vmem:[#allocation3 + $0x8] sm:$0xff]
      %v821 = vld [vmem:[#allocation3 + $0x10] sm:$0xff]
      %825 = vrot.lane.b32.xlu0 %v819, 126
      %v826 = vpop.permute.xlu0 %825
      %827 = vrot.lane.b32.xlu0 %v820, 126
      %v828 = vpop.permute.xlu0 %827
      %829 = vrot.lane.b32.xlu0 %v821, 126
      %v830 = vpop.permute.xlu0 %829
      %v831 = vsel %vm421, %v826, %v828
      %v832 = vsel %vm421, %v828, %v830
      %836 = vst [vmem:[#allocation5 + $0x30] sm:$0xff] %v831
      %837 = vst [vmem:[#allocation5 + $0x38] sm:$0xff] %v832
      %838 = vst.msk [vmem:[#allocation5 + $0x40] sm:$0xff] %vm386, %v830
      %v839 = vld [vmem:[#allocation3] sm:$0xff]
      %v840 = vld [vmem:[#allocation3 + $0x8] sm:$0xff]
      %v841 = vld [vmem:[#allocation3 + $0x10] sm:$0xff]
      %845 = vrot.lane.b32.xlu0 %v839, 110
      %v846 = vpop.permute.xlu0 %845
      %847 = vrot.lane.b32.xlu0 %v840, 110
      %v848 = vpop.permute.xlu0 %847
      %849 = vrot.lane.b32.xlu0 %v841, 110
      %v850 = vpop.permute.xlu0 %849
      %v851 = vsel %vm442, %v846, %v848
      %v852 = vsel %vm442, %v848, %v850
      %856 = vst [vmem:[#allocation5 + $0x48] sm:$0xff] %v851
      %857 = vst [vmem:[#allocation5 + $0x50] sm:$0xff] %v852
      %858 = vst.msk [vmem:[#allocation5 + $0x58] sm:$0xff] %vm386, %v850
      %v859 = vld [vmem:[#allocation3] sm:$0xff]
      %v860 = vld [vmem:[#allocation3 + $0x8] sm:$0xff]
      %v861 = vld [vmem:[#allocation3 + $0x10] sm:$0xff]
      %865 = vrot.lane.b32.xlu0 %v859, 109
      %v866 = vpop.permute.xlu0 %865
      %867 = vrot.lane.b32.xlu0 %v860, 109
      %v868 = vpop.permute.xlu0 %867
      %869 = vrot.lane.b32.xlu0 %v861, 109
      %v870 = vpop.permute.xlu0 %869
      %v871 = vsel %vm463, %v866, %v868
      %v872 = vsel %vm463, %v868, %v870
      %876 = vst [vmem:[#allocation5 + $0x60] sm:$0xff] %v871
      %877 = vst [vmem:[#allocation5 + $0x68] sm:$0xff] %v872
      %878 = vst.msk [vmem:[#allocation5 + $0x70] sm:$0xff] %vm386, %v870
      %v879 = vld [vmem:[#allocation3] sm:$0xff]
      %v880 = vld [vmem:[#allocation3 + $0x8] sm:$0xff]
      %v881 = vld [vmem:[#allocation3 + $0x10] sm:$0xff]
      %885 = vrot.lane.b32.xlu0 %v879, 108
      %v886 = vpop.permute.xlu0 %885
      %887 = vrot.lane.b32.xlu0 %v880, 108
      %v888 = vpop.permute.xlu0 %887
      %889 = vrot.lane.b32.xlu0 %v881, 108
      %v890 = vpop.permute.xlu0 %889
      %v891 = vsel %vm484, %v886, %v888
      %v892 = vsel %vm484, %v888, %v890
      %896 = vst [vmem:[#allocation5 + $0x78] sm:$0xff] %v891
      %897 = vst [vmem:[#allocation5 + $0x80] sm:$0xff] %v892
      %898 = vst.msk [vmem:[#allocation5 + $0x88] sm:$0xff] %vm386, %v890
      %v899 = vld [vmem:[#allocation3] sm:$0xff]
      %v900 = vld [vmem:[#allocation3 + $0x8] sm:$0xff]
      %v901 = vld [vmem:[#allocation3 + $0x10] sm:$0xff]
      %905 = vrot.lane.b32.xlu0 %v899, 92
      %v906 = vpop.permute.xlu0 %905
      %907 = vrot.lane.b32.xlu0 %v900, 92
      %v908 = vpop.permute.xlu0 %907
      %909 = vrot.lane.b32.xlu0 %v901, 92
      %v910 = vpop.permute.xlu0 %909
      %v911 = vsel %vm505, %v906, %v908
      %v912 = vsel %vm505, %v908, %v910
      %916 = vst [vmem:[#allocation5 + $0x90] sm:$0xff] %v911
      %917 = vst [vmem:[#allocation5 + $0x98] sm:$0xff] %v912
      %918 = vst.msk [vmem:[#allocation5 + $0xa0] sm:$0xff] %vm386, %v910
      %v919 = vld [vmem:[#allocation3] sm:$0xff]
      %v920 = vld [vmem:[#allocation3 + $0x8] sm:$0xff]
      %v921 = vld [vmem:[#allocation3 + $0x10] sm:$0xff]
      %925 = vrot.lane.b32.xlu0 %v919, 91
      %v926 = vpop.permute.xlu0 %925
      %927 = vrot.lane.b32.xlu0 %v920, 91
      %v928 = vpop.permute.xlu0 %927
      %929 = vrot.lane.b32.xlu0 %v921, 91
      %v930 = vpop.permute.xlu0 %929
      %v931 = vsel %vm526, %v926, %v928
      %v932 = vsel %vm526, %v928, %v930
      %936 = vst [vmem:[#allocation5 + $0xa8] sm:$0xff] %v931
      %937 = vst [vmem:[#allocation5 + $0xb0] sm:$0xff] %v932
      %938 = vst.msk [vmem:[#allocation5 + $0xb8] sm:$0xff] %vm386, %v930
      %v939 = vld [vmem:[#allocation3] sm:$0xff]
      %v940 = vld [vmem:[#allocation3 + $0x8] sm:$0xff]
      %v941 = vld [vmem:[#allocation3 + $0x10] sm:$0xff]
      %945 = vrot.lane.b32.xlu0 %v939, 90
      %v946 = vpop.permute.xlu0 %945
      %947 = vrot.lane.b32.xlu0 %v940, 90
      %v948 = vpop.permute.xlu0 %947
      %949 = vrot.lane.b32.xlu0 %v941, 90
      %v950 = vpop.permute.xlu0 %949
      %v951 = vsel %vm547, %v946, %v948
      %v952 = vsel %vm547, %v948, %v950
      %956 = vst [vmem:[#allocation5 + $0xc0] sm:$0xff] %v951
      %957 = vst [vmem:[#allocation5 + $0xc8] sm:$0xff] %v952
      %958 = vst.msk [vmem:[#allocation5 + $0xd0] sm:$0xff] %vm386, %v950
      %v959 = vld [vmem:[#allocation2] sm:$0xff]
      %v960 = vld [vmem:[#allocation2 + $0x8] sm:$0xff]
      %v961 = vld [vmem:[#allocation2 + $0x10] sm:$0xff]
      %965 = vrot.lane.b32.xlu0 %v959, 109
      %v966 = vpop.permute.xlu0 %965
      %967 = vrot.lane.b32.xlu0 %v960, 109
      %v968 = vpop.permute.xlu0 %967
      %969 = vrot.lane.b32.xlu0 %v961, 109
      %v970 = vpop.permute.xlu0 %969
      %v971 = vsel %vm463, %v966, %v968
      %v972 = vsel %vm463, %v968, %v970
      %976 = vst [vmem:[#allocation5 + $0xd8] sm:$0xff] %v971
      %977 = vst [vmem:[#allocation5 + $0xe0] sm:$0xff] %v972
      %978 = vst.msk [vmem:[#allocation5 + $0xe8] sm:$0xff] %vm386, %v970
      %v979 = vld [vmem:[%s8] sm:$0xff]
      %v980 = vld [vmem:[#allocation5] sm:$0xff]
      %v981 = vld [vmem:[#allocation5 + $0x8] sm:$0xff]
      %v982 = vld [vmem:[#allocation5 + $0x10] sm:$0xff]
      %v983 = vld [vmem:[#allocation5 + $0x18] sm:$0xff]
      %v984 = vld [vmem:[#allocation5 + $0x20] sm:$0xff]
      %v985 = vld [vmem:[#allocation5 + $0x28] sm:$0xff]
      %v986 = vld [vmem:[#allocation5 + $0x30] sm:$0xff]
      %v987 = vld [vmem:[#allocation5 + $0x38] sm:$0xff]
      %v988 = vld [vmem:[#allocation5 + $0x40] sm:$0xff]
      %v989 = vld [vmem:[#allocation5 + $0x48] sm:$0xff]
      %v990 = vld [vmem:[#allocation5 + $0x50] sm:$0xff]
      %v991 = vld [vmem:[#allocation5 + $0x58] sm:$0xff]
      %v992 = vld [vmem:[#allocation5 + $0x60] sm:$0xff]
      %v993 = vld [vmem:[#allocation5 + $0x68] sm:$0xff]
      %v994 = vld [vmem:[#allocation5 + $0x70] sm:$0xff]
      %v995 = vld [vmem:[#allocation5 + $0x78] sm:$0xff]
      %v996 = vld [vmem:[#allocation5 + $0x80] sm:$0xff]
      %v997 = vld [vmem:[#allocation5 + $0x88] sm:$0xff]
      %v998 = vld [vmem:[#allocation5 + $0x90] sm:$0xff]
      %v999 = vld [vmem:[#allocation5 + $0x98] sm:$0xff]
      %v1000 = vld [vmem:[#allocation5 + $0xa0] sm:$0xff]
      %v1001 = vld [vmem:[#allocation5 + $0xa8] sm:$0xff]
      %v1002 = vld [vmem:[#allocation5 + $0xb0] sm:$0xff]
      %v1003 = vld [vmem:[#allocation5 + $0xb8] sm:$0xff]
      %v1004 = vld [vmem:[#allocation5 + $0xc0] sm:$0xff]
      %v1005 = vld [vmem:[#allocation5 + $0xc8] sm:$0xff]
      %v1006 = vld [vmem:[#allocation5 + $0xd0] sm:$0xff]
      %v1007 = vld [vmem:[#allocation5 + $0xd8] sm:$0xff]
      %v1008 = vld [vmem:[#allocation5 + $0xe0] sm:$0xff]
      %v1009 = vld [vmem:[#allocation5 + $0xe8] sm:$0xff]
      %vm1010 = vcmask 654336
      %v1012 = vsel %vm1010, %v979, 0
      %1014 = vmatprep.subr.mxu0 %v981
      %1015 = vmatpush1.msra.mxu0 %v980
      %1016 = vmatprep.subr.mxu0 %v984
      %1017 = vmatpush1.msra.mxu0 %v983
      %1018 = vmatprep.subr.mxu0 %v987
      %1019 = vmatpush1.msra.mxu0 %v986
      %1020 = vmatprep.subr.mxu0 %v990
      %1021 = vmatpush1.msra.mxu0 %v989
      %1022 = vmatprep.subr.mxu0 %v993
      %1023 = vmatpush1.msra.mxu0 %v992
      %1024 = vmatprep.subr.mxu0 %v996
      %1025 = vmatpush1.msra.mxu0 %v995
      %1026 = vmatprep.subr.mxu0 %v999
      %1027 = vmatpush1.msra.mxu0 %v998
      %1028 = vmatprep.subr.mxu0 %v1002
      %1029 = vmatpush1.msra.mxu0 %v1001
      %1030 = vmatprep.subr.mxu0 %v1005
      %1031 = vmatpush1.msra.mxu0 %v1004
      %1032 = vmatprep.subr.mxu0 %v1008
      %1033 = vmatpush1.msra.mxu0 %v1007
      %1034 = vmatprep.subr.mxu0 0.0
      %1035 = vmatpush1.msra.mxu0 0.0
      %1036 = vmatprep.subr.mxu0 0.0
      %1037 = vmatpush1.msra.mxu0 0.0
      %1038 = vmatprep.subr.mxu0 0.0
      %1039 = vmatpush1.msra.mxu0 0.0
      %1040 = vmatprep.subr.mxu0 0.0
      %1041 = vmatpush1.msra.mxu0 0.0
      %1042 = vmatprep.subr.mxu0 0.0
      %1043 = vmatpush1.msra.mxu0 0.0
      %1044 = vmatprep.subr.mxu0 0.0
      %1045 = vmatpush1.msra.mxu0 0.0
      %1046 = vmatprep.subr.mxu0 0.0
      %1047 = vmatpush1.msra.mxu0 0.0
      %1048 = vmatprep.subr.mxu0 0.0
      %1049 = vmatpush1.msra.mxu0 0.0
      %1050 = vmatprep.subr.mxu0 0.0
      %1051 = vmatpush1.msra.mxu0 0.0
      %1052 = vmatprep.subr.mxu0 0.0
      %1053 = vmatpush1.msra.mxu0 0.0
      %1054 = vmatprep.subr.mxu0 0.0
      %1055 = vmatpush1.msra.mxu0 0.0
      %1056 = vmatprep.subr.mxu0 0.0
      %1057 = vmatpush1.msra.mxu0 0.0
      %1058 = vmatprep.subr.mxu0 0.0
      %1059 = vmatpush1.msra.mxu0 0.0
      %1060 = vmatprep.subr.mxu0 0.0
      %1061 = vmatpush1.msra.mxu0 0.0
      %1062 = vmatprep.subr.mxu0 0.0
      %1063 = vmatpush1.msra.mxu0 0.0
      %1064 = vmatprep.subr.mxu0 0.0
      %1065 = vmatpush1.msra.mxu0 0.0
      %1066 = vmatprep.subr.mxu0 0.0
      %1067 = vmatpush1.msra.mxu0 0.0
      %1068 = vmatprep.subr.mxu0 0.0
      %1069 = vmatpush1.msra.mxu0 0.0
      %1070 = vmatprep.subr.mxu0 0.0
      %1071 = vmatpush1.msra.mxu0 0.0
      %1072 = vmatprep.subr.mxu0 0.0
      %1073 = vmatpush1.msra.mxu0 0.0
      %1074 = vmatprep.subr.mxu0 0.0
      %1075 = vmatpush1.msra.mxu0 0.0
      %1076 = vmatprep.subr.mxu0 0.0
      %1077 = vmatpush1.msra.mxu0 0.0
      %1078 = vmatprep.mubr.f32.mxu0 0.0
      %1079 = vmatmul.mubr.f32.gmra.mrb[0].mxu0 %v1012
      %v1080 = vpop.f32.mrb[0].mxu0
      %v1081 = vadd.f32 0.0, %v1080
      %v1082 = vpop.f32.mrb[0].mxu0
      %v1083 = vadd.f32 0.0, %v1082
      %1084 = vdwg.mxu0
      %1085 = vmatprep.subr.mxu0 0.0
      %1086 = vmatpush1.msra.mxu0 %v982
      %1087 = vmatprep.subr.mxu0 0.0
      %1088 = vmatpush1.msra.mxu0 %v985
      %1089 = vmatprep.subr.mxu0 0.0
      %1090 = vmatpush1.msra.mxu0 %v988
      %1091 = vmatprep.subr.mxu0 0.0
      %1092 = vmatpush1.msra.mxu0 %v991
      %1093 = vmatprep.subr.mxu0 0.0
      %1094 = vmatpush1.msra.mxu0 %v994
      %1095 = vmatprep.subr.mxu0 0.0
      %1096 = vmatpush1.msra.mxu0 %v997
      %1097 = vmatprep.subr.mxu0 0.0
      %1098 = vmatpush1.msra.mxu0 %v1000
      %1099 = vmatprep.subr.mxu0 0.0
      %1100 = vmatpush1.msra.mxu0 %v1003
      %1101 = vmatprep.subr.mxu0 0.0
      %1102 = vmatpush1.msra.mxu0 %v1006
      %1103 = vmatprep.subr.mxu0 0.0
      %1104 = vmatpush1.msra.mxu0 %v1009
      %1105 = vmatprep.subr.mxu0 0.0
      %1106 = vmatpush1.msra.mxu0 0.0
      %1107 = vmatprep.subr.mxu0 0.0
      %1108 = vmatpush1.msra.mxu0 0.0
      %1109 = vmatprep.subr.mxu0 0.0
      %1110 = vmatpush1.msra.mxu0 0.0
      %1111 = vmatprep.subr.mxu0 0.0
      %1112 = vmatpush1.msra.mxu0 0.0
      %1113 = vmatprep.subr.mxu0 0.0
      %1114 = vmatpush1.msra.mxu0 0.0
      %1115 = vmatprep.subr.mxu0 0.0
      %1116 = vmatpush1.msra.mxu0 0.0
      %1117 = vmatprep.subr.mxu0 0.0
      %1118 = vmatpush1.msra.mxu0 0.0
      %1119 = vmatprep.subr.mxu0 0.0
      %1120 = vmatpush1.msra.mxu0 0.0
      %1121 = vmatprep.subr.mxu0 0.0
      %1122 = vmatpush1.msra.mxu0 0.0
      %1123 = vmatprep.subr.mxu0 0.0
      %1124 = vmatpush1.msra.mxu0 0.0
      %1125 = vmatprep.subr.mxu0 0.0
      %1126 = vmatpush1.msra.mxu0 0.0
      %1127 = vmatprep.subr.mxu0 0.0
      %1128 = vmatpush1.msra.mxu0 0.0
      %1129 = vmatprep.subr.mxu0 0.0
      %1130 = vmatpush1.msra.mxu0 0.0
      %1131 = vmatprep.subr.mxu0 0.0
      %1132 = vmatpush1.msra.mxu0 0.0
      %1133 = vmatprep.subr.mxu0 0.0
      %1134 = vmatpush1.msra.mxu0 0.0
      %1135 = vmatprep.subr.mxu0 0.0
      %1136 = vmatpush1.msra.mxu0 0.0
      %1137 = vmatprep.subr.mxu0 0.0
      %1138 = vmatpush1.msra.mxu0 0.0
      %1139 = vmatprep.subr.mxu0 0.0
      %1140 = vmatpush1.msra.mxu0 0.0
      %1141 = vmatprep.subr.mxu0 0.0
      %1142 = vmatpush1.msra.mxu0 0.0
      %1143 = vmatprep.subr.mxu0 0.0
      %1144 = vmatpush1.msra.mxu0 0.0
      %1145 = vmatprep.subr.mxu0 0.0
      %1146 = vmatpush1.msra.mxu0 0.0
      %1147 = vmatprep.subr.mxu0 0.0
      %1148 = vmatpush1.msra.mxu0 0.0
      %1149 = vmatprep.mubr.f32.mxu0 0.0
      %1150 = vmatmul.mubr.f32.gmra.mrb[0].mxu0 %v1012
      %v1151 = vpop.f32.mrb[0].mxu0
      %v1152 = vadd.f32 0.0, %v1151
      %v1153 = vpop.f32.mrb[0].mxu0
      %1154 = vdwg.mxu0
      %1155 = vst [vmem:[%s332] sm:$0xff] %v1081
      %1156 = vst [vmem:[%s332 + $0x8] sm:$0xff] %v1083
      %1157 = vst.msk [vmem:[%s332 + $0x10] sm:$0xff] %vm386, %v1152
      %p1158 = scmp.lt.s32.totalorder %s20, 1
      %s1159 = scalar_select %p1158, %s20, 1
      %s1160 = smul.addr %s1159, 3
      %s1161 = smul.addr %s1160, 8
      %s1162 = scalar_lea.vmem %s9, %s1161
      // Predicated region
      $region57: #{preres_unit_forward.1} parent=55 // pred_check
        %p1163 = pneg %p232
      $region58: #{preres_unit_forward.1} parent=55 // pred_check_branch
        %1165 = sbr.rel (%p1163) target = $region60
      $region59: #{preres_unit_forward.1} parent=55 // pred_region
        _
      $region60: #{preres_unit_forward.1} parent=55 // pred_fallthru
        _
    $region56: #{preres_unit_forward.1} parent=5 // pred_fallthru
      _
    %p1166 = scmp.le.s32.totalorder 2, %s15
    // Predicated region
    $region61: #{preres_unit_forward.1} parent=5 // pred_check
      %p1167 = pneg %p1166
    $region62: #{preres_unit_forward.1} parent=5 // pred_check_branch
      %1169 = sbr.rel (%p1167) target = $region64
    $region63: #{preres_unit_forward.1} parent=5 // pred_region
      %s1170 = ssub.s32 %s15, 2
      // Predicated region
      $region65: #{preres_unit_forward.1} parent=63 // pred_check
        %p1171 = pneg %p238
      $region66: #{preres_unit_forward.1} parent=63 // pred_check_branch
        %1173 = sbr.rel (%p1171) target = $region68
      $region67: #{preres_unit_forward.1} parent=63 // pred_region
        %p1174 = scmp.lt.s32.totalorder %s21, 1
        %s1175 = scalar_select %p1174, %s21, 1
        %s1176 = smul.addr %s1175, 3
        %s1177 = smul.addr %s1176, 8
        %s1178 = scalar_lea.vmem %s9, %s1177
      $region68: #{preres_unit_forward.1} parent=63 // pred_fallthru
        _
    $region64: #{preres_unit_forward.1} parent=5 // pred_fallthru
      _
  $region6: #{preres_unit_forward.1} parent=0 // loop_footer
    %s19 = sadd.s32 1, %s15
  $region7: #{preres_unit_forward.1} parent=0 // loop_footer_branch
    %14 = sbr.rel target = $region3
  $region8: #{preres_unit_forward.1} parent=0 // loop_exit
    _

</llo_original>
